<compile_context>
chip_gen: v6e
topology: v6e:2x2x1
jax: 0.10.0
libtpu: 0.0.40
codegen_flags: <defaults>
</compile_context>

<pallas_src>
import functools

import jax
import jax.numpy as jnp
from jax import lax
from jax.experimental import pallas as pl
from jax.experimental.pallas import tpu as pltpu


# ----------------------------------------------------------------------------
# Kernel bodies
# ----------------------------------------------------------------------------
def _finalize_head(pooled_col, g_ref, b_ref, w_ref, hb_ref, o_ref, eps):
    """LayerNorm over channels + tiny linear head.  Channels live on sublanes.

    pooled_col: (C, 1) f32 pooled features for one sample.
    g_ref/b_ref: (C, 1) f32 LayerNorm gamma/beta.
    w_ref: (C, NC) head weight; hb_ref: (1, NC) head bias.
    o_ref: (1, 1, NC) output block for this sample.
    """
    mu = jnp.mean(pooled_col, axis=0, keepdims=True)            # (1, 1)
    xc = pooled_col - mu
    var = jnp.mean(xc * xc, axis=0, keepdims=True)              # biased var (torch LN)
    y = xc * lax.rsqrt(var + eps) * g_ref[...] + b_ref[...]     # (C, 1) f32
    # num_classes is tiny (2): per-class dot = VPU multiply + sublane reduce.
    # Avoids an in-kernel transpose and an MXU pass.  (If NC were large, feed the
    # MXU with bf16 operands instead.)
    logits = jnp.sum(y * w_ref[...].astype(jnp.float32), axis=0, keepdims=True)  # (1, NC)
    o_ref[0] = (logits + hb_ref[...].astype(jnp.float32)).astype(o_ref.dtype)


def _single_kernel(x_ref, g_ref, b_ref, w_ref, hb_ref, o_ref, *, inv_hw, eps):
    """Whole sample fits one tile: no reduction-axis bookkeeping at all."""
    x = x_ref[0].astype(jnp.float32)                            # (C, H, W)
    part = jnp.sum(x, axis=1)                                   # (C, W) lane-dense
    pooled = jnp.sum(part, axis=-1, keepdims=True) * inv_hw     # (C, 1)
    _finalize_head(pooled, g_ref, b_ref, w_ref, hb_ref, o_ref, eps)


def _stream_kernel(x_ref, g_ref, b_ref, w_ref, hb_ref, o_ref, acc_ref, *, inv_hw, eps):
    """Streaming pool over H tiles; LN + head fused into the finalize."""
    h = pl.program_id(1)

    @pl.when(h == 0)
    def _init():
        acc_ref[...] = jnp.zeros_like(acc_ref)

    # Steady state: lane-dense (C, W) accumulator.  Only a sublane reduce over the
    # h-tile per step -- pure vld/vadd work that hides under the HBM DMA.
    acc_ref[...] += jnp.sum(x_ref[0].astype(jnp.float32), axis=1)

    @pl.when(h == pl.num_programs(1) - 1)
    def _fin():
        pooled = jnp.sum(acc_ref[...], axis=-1, keepdims=True) * inv_hw   # (C, 1)
        _finalize_head(pooled, g_ref, b_ref, w_ref, hb_ref, o_ref, eps)


# ----------------------------------------------------------------------------
# Tiling / VMEM budgeting
# ----------------------------------------------------------------------------
def _vmem_capacity_bytes() -> int:
    try:
        return int(pltpu.get_tpu_info().vmem_capacity_bytes)
    except Exception:
        return 64 << 20   # conservative fallback (v7x-sized)


def _pick_h_tile(C: int, H: int, W: int, itemsize: int, tile_budget: int) -> int:
    """Largest legal H-tile whose (1, C, th, W) block fits the per-tile budget.

    th must be a multiple of 8 (sublane constraint on the second-to-last block dim)
    or equal the full H.
    """
    row_bytes = C * W * itemsize                 # bytes per h-row of one sample
    if row_bytes * H <= tile_budget:
        return H                                 # whole sample in one tile
    best = None
    th = 8
    while th <= H:
        if H % th == 0 and row_bytes * th <= tile_budget:
            best = th
        th += 8
    if best is not None:
        return best
    # No multiple-of-8 divisor fits: take the smallest legal tile.
    return 8 if H % 8 == 0 else H


# ----------------------------------------------------------------------------
# Wrapper
# ----------------------------------------------------------------------------
def mamba2d_head_forward(feat, gamma, beta, w_head, b_head, *,
                         eps=1e-5, out_dtype=None, tile_budget_bytes=None):
    """Mamba2D wrapper forward, starting from the backbone feature map.

    feat: [B, C, H', W'] (NCHW backbone output) -> logits [B, num_classes]
    Equivalent to:  head(LayerNorm(feat.mean((-2, -1))))
    """
    B, C, H, W = feat.shape
    NC = w_head.shape[-1]
    if out_dtype is None:
        out_dtype = w_head.dtype
    inv_hw = 1.0 / float(H * W)
    itemsize = jnp.dtype(feat.dtype).itemsize

    # Generation-aware tile budget: double-buffered input stays well inside VMEM
    # on v7x (64 MiB per TC) as well as v5e/v6e (128 MiB); gains flatten past a
    # few-MiB tiles for an HBM-bound streaming kernel, so cap at 16 MiB.
    cap = _vmem_capacity_bytes()
    if tile_budget_bytes is None:
        tile_budget_bytes = min(cap // 4, 16 << 20)
    th = _pick_h_tile(C, H, W, itemsize, tile_budget_bytes)
    n_h = pl.cdiv(H, th) if H % th else H // th   # th divides H by construction
    tile_bytes = C * th * W * itemsize
    vmem_limit = int(min(max(2 * tile_bytes + (8 << 20), 32 << 20), int(cap * 0.85)))

    g2 = gamma.reshape(C, 1).astype(jnp.float32)
    b2 = beta.reshape(C, 1).astype(jnp.float32)
    hb2 = b_head.reshape(1, NC)

    if n_h == 1:
        grid = (B,)
        kernel = functools.partial(_single_kernel, inv_hw=inv_hw, eps=eps)
        feat_spec = pl.BlockSpec((1, C, H, W), lambda b: (b, 0, 0, 0))
        out_spec = pl.BlockSpec((1, 1, NC), lambda b: (b, 0, 0))
        param_map = lambda b: (0, 0)
        scratch = []
        dims = ("parallel",)
    else:
        grid = (B, n_h)
        kernel = functools.partial(_stream_kernel, inv_hw=inv_hw, eps=eps)
        feat_spec = pl.BlockSpec((1, C, th, W), lambda b, h: (b, 0, h, 0))
        out_spec = pl.BlockSpec((1, 1, NC), lambda b, h: (b, 0, 0))
        param_map = lambda b, h: (0, 0)
        scratch = [pltpu.VMEM((C, W), jnp.float32)]
        dims = ("parallel", "arbitrary")   # B parallel (megacore), reduction axis last

    out = pl.pallas_call(
        kernel,
        out_shape=jax.ShapeDtypeStruct((B, 1, NC), out_dtype),
        grid_spec=pltpu.PrefetchScalarGridSpec(
            num_scalar_prefetch=0,
            grid=grid,
            in_specs=[
                feat_spec,
                pl.BlockSpec((C, 1), param_map),    # gamma (resident)
                pl.BlockSpec((C, 1), param_map),    # beta  (resident)
                pl.BlockSpec((C, NC), param_map),   # head weight (resident)
                pl.BlockSpec((1, NC), param_map),   # head bias (resident)
            ],
            out_specs=out_spec,
            scratch_shapes=scratch,
        ),
        compiler_params=pltpu.CompilerParams(
            dimension_semantics=dims,
            vmem_limit_bytes=vmem_limit,
        ),
        cost_estimate=pl.CostEstimate(
            flops=feat.size + 2 * B * C * NC + 6 * B * C,
            transcendentals=B,
            bytes_accessed=feat.size * itemsize + (C * (2 + NC) + NC) * 4 + B * NC * itemsize,
        ),
    )(feat, g2, b2, w_head, hb2)
    return out.reshape(B, NC)


# ----------------------------------------------------------------------------
# Demo / self-check
# ----------------------------------------------------------------------------
if __name__ == "__main__":
    key = jax.random.PRNGKey(0)
    kf, kg, kb, kw, kbh = jax.random.split(key, 5)

    # Small shapes consistent with the module: embed_dim (input_dim) = 192,
    # num_classes = 2 (output_shape), a 16x16 backbone feature map, batch = 2.
    B, C, Hf, Wf, NC = 2, 192, 16, 16, 2
    feat = jax.random.normal(kf, (B, C, Hf, Wf), jnp.float32)
    gamma = 1.0 + 0.1 * jax.random.normal(kg, (C,), jnp.float32)
    beta = 0.1 * jax.random.normal(kb, (C,), jnp.float32)
    w_head = jax.random.normal(kw, (C, NC), jnp.float32) / (C ** 0.5)
    b_head = 0.1 * jax.random.normal(kbh, (NC,), jnp.float32)

    # Pure-JAX reference (LayerNorm eps = 1e-5, matching torch.nn.LayerNorm default).
    pooled_ref = feat.mean((-2, -1))
    mu = pooled_ref.mean(-1, keepdims=True)
    var = ((pooled_ref - mu) ** 2).mean(-1, keepdims=True)
    normed = (pooled_ref - mu) / jnp.sqrt(var + 1e-5) * gamma + beta
    ref = normed @ w_head + b_head

    # 1) Default path (small map -> single-pass kernel, grid (B,)).
    out = jax.block_until_ready(
        mamba2d_head_forward(feat, gamma, beta, w_head, b_head)
    )
    assert out.shape == (B, NC)
    assert jnp.allclose(out, ref, atol=1e-4, rtol=1e-4), (out, ref)

    # 2) Force the streaming path (tiny tile budget -> H-tiled grid (B, n_h))
    #    to exercise the accumulator / pl.when bookkeeping as well.
    out_stream = jax.block_until_ready(
        mamba2d_head_forward(feat, gamma, beta, w_head, b_head,
                             tile_budget_bytes=64 << 10)
    )
    assert out_stream.shape == (B, NC)
    assert jnp.allclose(out_stream, ref, atol=1e-4, rtol=1e-4), (out_stream, ref)

    print("KERNEL_OK")
</pallas_src>

<mosaic_0001>
module attributes {stable_mosaic.version = 11 : i64} {
  func.func @_single_kernel(%arg0: i32, %arg1: memref<1x192x16x16xf32, #tpu.memory_space<vmem>>, %arg2: memref<192x1xf32, #tpu.memory_space<vmem>>, %arg3: memref<192x1xf32, #tpu.memory_space<vmem>>, %arg4: memref<192x2xf32, #tpu.memory_space<vmem>>, %arg5: memref<1x2xf32, #tpu.memory_space<vmem>>, %arg6: memref<1x1x2xf32, #tpu.memory_space<vmem>>) attributes {dimension_semantics = [#tpu.dimension_semantics<parallel>], iteration_bounds = array<i64: 2>, scalar_prefetch = 0 : i64, scratch_operands = 0 : i64, tpu.core_type = #tpu.core_type<tc>, window_params = [{transform_indices = @transform_0, window_bounds = array<i64: 1, 192, 16, 16>}, {pipeline_mode = #tpu.pipeline_mode<synchronous>, transform_indices = @transform_1, window_bounds = array<i64: 192, 1>}, {pipeline_mode = #tpu.pipeline_mode<synchronous>, transform_indices = @transform_2, window_bounds = array<i64: 192, 1>}, {pipeline_mode = #tpu.pipeline_mode<synchronous>, transform_indices = @transform_3, window_bounds = array<i64: 192, 2>}, {pipeline_mode = #tpu.pipeline_mode<synchronous>, transform_indices = @transform_4, window_bounds = array<i64: 1, 2>}, {transform_indices = @transform_5, window_bounds = array<i64: 1, 1, 2>}]} {
    %c0 = arith.constant 0 : index
    %c0_0 = arith.constant 0 : index
    %c0_1 = arith.constant 0 : index
    %c0_2 = arith.constant 0 : index
    %0 = vector.load %arg1[%c0, %c0_0, %c0_1, %c0_2] : memref<1x192x16x16xf32, #tpu.memory_space<vmem>>, vector<1x192x16x16xf32>
    %1 = vector.shape_cast %0 : vector<1x192x16x16xf32> to vector<192x16x16xf32>
    %cst = arith.constant dense<0.000000e+00> : vector<192x16xf32>
    %2 = vector.multi_reduction <add>, %1, %cst [1] : vector<192x16x16xf32> to vector<192x16xf32>
    %cst_3 = arith.constant dense<0.000000e+00> : vector<192xf32>
    %3 = vector.multi_reduction <add>, %2, %cst_3 [1] : vector<192x16xf32> to vector<192xf32>
    %4 = vector.shape_cast %3 : vector<192xf32> to vector<192x1xf32>
    %cst_4 = arith.constant 3.906250e-03 : f32
    %5 = vector.broadcast %cst_4 : f32 to vector<192x1xf32>
    %6 = arith.mulf %4, %5 : vector<192x1xf32>
    %cst_5 = arith.constant dense<0.000000e+00> : vector<1xf32>
    %7 = vector.multi_reduction <add>, %6, %cst_5 [0] : vector<192x1xf32> to vector<1xf32>
    %8 = vector.shape_cast %7 : vector<1xf32> to vector<1x1xf32>
    %cst_6 = arith.constant 1.920000e+02 : f32
    %9 = vector.broadcast %cst_6 : f32 to vector<1x1xf32>
    %10 = arith.divf %8, %9 : vector<1x1xf32>
    %11 = vector.broadcast %10 : vector<1x1xf32> to vector<192x1xf32>
    %12 = arith.subf %6, %11 : vector<192x1xf32>
    %13 = arith.mulf %12, %12 : vector<192x1xf32>
    %cst_7 = arith.constant dense<0.000000e+00> : vector<1xf32>
    %14 = vector.multi_reduction <add>, %13, %cst_7 [0] : vector<192x1xf32> to vector<1xf32>
    %15 = vector.shape_cast %14 : vector<1xf32> to vector<1x1xf32>
    %cst_8 = arith.constant 1.920000e+02 : f32
    %16 = vector.broadcast %cst_8 : f32 to vector<1x1xf32>
    %17 = arith.divf %15, %16 : vector<1x1xf32>
    %cst_9 = arith.constant 9.99999974E-6 : f32
    %18 = vector.broadcast %cst_9 : f32 to vector<1x1xf32>
    %19 = arith.addf %17, %18 : vector<1x1xf32>
    %20 = math.rsqrt %19 : vector<1x1xf32>
    %21 = vector.broadcast %20 : vector<1x1xf32> to vector<192x1xf32>
    %22 = arith.mulf %12, %21 : vector<192x1xf32>
    %c0_10 = arith.constant 0 : index
    %c0_11 = arith.constant 0 : index
    %23 = vector.load %arg2[%c0_10, %c0_11] : memref<192x1xf32, #tpu.memory_space<vmem>>, vector<192x1xf32>
    %24 = arith.mulf %22, %23 : vector<192x1xf32>
    %c0_12 = arith.constant 0 : index
    %c0_13 = arith.constant 0 : index
    %25 = vector.load %arg3[%c0_12, %c0_13] : memref<192x1xf32, #tpu.memory_space<vmem>>, vector<192x1xf32>
    %26 = arith.addf %24, %25 : vector<192x1xf32>
    %c0_14 = arith.constant 0 : index
    %c0_15 = arith.constant 0 : index
    %27 = vector.load %arg4[%c0_14, %c0_15] : memref<192x2xf32, #tpu.memory_space<vmem>>, vector<192x2xf32>
    %28 = vector.broadcast %26 : vector<192x1xf32> to vector<192x2xf32>
    %29 = arith.mulf %28, %27 : vector<192x2xf32>
    %cst_16 = arith.constant dense<0.000000e+00> : vector<2xf32>
    %30 = vector.multi_reduction <add>, %29, %cst_16 [0] : vector<192x2xf32> to vector<2xf32>
    %31 = vector.shape_cast %30 : vector<2xf32> to vector<1x2xf32>
    %c0_17 = arith.constant 0 : index
    %c0_18 = arith.constant 0 : index
    %32 = vector.load %arg5[%c0_17, %c0_18] : memref<1x2xf32, #tpu.memory_space<vmem>>, vector<1x2xf32>
    %33 = arith.addf %31, %32 : vector<1x2xf32>
    %c0_19 = arith.constant 0 : index
    %c0_20 = arith.constant 0 : index
    %c0_21 = arith.constant 0 : index
    %34 = vector.load %arg6[%c0_19, %c0_20, %c0_21] : memref<1x1x2xf32, #tpu.memory_space<vmem>>, vector<1x1x2xf32>
    %35 = vector.shape_cast %34 : vector<1x1x2xf32> to vector<1x2xf32>
    %36 = vector.shape_cast %33 : vector<1x2xf32> to vector<1x1x2xf32>
    tpu.vector_store %arg6[%c0_19, %c0_20, %c0_21], %36 {strides = array<i32>} : memref<1x1x2xf32, #tpu.memory_space<vmem>>, vector<1x1x2xf32>,
    return
  }
  func.func @transform_0(%arg0: i32) -> (i32, i32, i32, i32) {
    %c0_i32 = arith.constant 0 : i32
    %c0_i32_0 = arith.constant 0 : i32
    %c0_i32_1 = arith.constant 0 : i32
    %c0_i32_2 = arith.constant 0 : i32
    return %arg0, %c0_i32, %c0_i32_0, %c0_i32_1 : i32, i32, i32, i32
  }
  func.func @transform_1(%arg0: i32) -> (i32, i32) {
    %c0_i32 = arith.constant 0 : i32
    %c0_i32_0 = arith.constant 0 : i32
    %c0_i32_1 = arith.constant 0 : i32
    return %c0_i32, %c0_i32_0 : i32, i32
  }
  func.func @transform_2(%arg0: i32) -> (i32, i32) {
    %c0_i32 = arith.constant 0 : i32
    %c0_i32_0 = arith.constant 0 : i32
    %c0_i32_1 = arith.constant 0 : i32
    return %c0_i32, %c0_i32_0 : i32, i32
  }
  func.func @transform_3(%arg0: i32) -> (i32, i32) {
    %c0_i32 = arith.constant 0 : i32
    %c0_i32_0 = arith.constant 0 : i32
    %c0_i32_1 = arith.constant 0 : i32
    return %c0_i32, %c0_i32_0 : i32, i32
  }
  func.func @transform_4(%arg0: i32) -> (i32, i32) {
    %c0_i32 = arith.constant 0 : i32
    %c0_i32_0 = arith.constant 0 : i32
    %c0_i32_1 = arith.constant 0 : i32
    return %c0_i32, %c0_i32_0 : i32, i32
  }
  func.func @transform_5(%arg0: i32) -> (i32, i32, i32) {
    %c0_i32 = arith.constant 0 : i32
    %c0_i32_0 = arith.constant 0 : i32
    %c0_i32_1 = arith.constant 0 : i32
    return %arg0, %c0_i32, %c0_i32_0 : i32, i32, i32
  }
}

</mosaic_0001>

<llo_original>
// kernel: tpu_custom_call.1
$region0: #{tpu_custom_call.1}
  #allocation0 [shape = 'u32[]', space=smem, size = 0x4, offset = 0x4, fixed_abs, tag = 'smem constant byte address 0x4 - core index']
  #allocation1 [shape = 'u32[144,128]{1,0:T(1,128)}', space=vmem, size = 0x12000, scoped, tag = 'internal scratch']
  %s0 = inlined_call_operand.vmem [shape: f32[2,192,16,16], index: 0, kind: input, shape index: {}]
  %s1 = inlined_call_operand.vmem [shape: f32[192,1], index: 1, kind: input, shape index: {}]
  %s2 = inlined_call_operand.vmem [shape: f32[192,1], index: 2, kind: input, shape index: {}]
  %s3 = inlined_call_operand.vmem [shape: f32[192,2], index: 3, kind: input, shape index: {}]
  %s4 = inlined_call_operand.vmem [shape: f32[1,2], index: 4, kind: input, shape index: {}]
  %s5 = inlined_call_operand.hbm [shape: f32[2,1,2], index: 5, kind: output, shape index: {}]
  %s6 = sld [smem:[#allocation0]]
  $region53: #{tpu_custom_call.1} parent=0
    _
  %s8 = ssub.s32 1, %s6
  %s9 = scalar_select 0, %s8, %s6
  $region1: #{tpu_custom_call.1} parent=0
    #allocation2 [shape = 'u8[1024]{0}', space=vmem, size = 0x400, scoped, tag = 'output window, operand 0']
    #allocation3 [shape = 's32[2]{0}', space=sflag, size = 0x8, scoped, tag = 'scoped memory for tpu_custom_call.1']
    %10 = vsyncpa [#allocation3], 0
    %s11 = scalar_lea.sflag [#allocation3], 1
    %12 = vsyncpa %s11, 0
    loop: start=0, step=1, limit=4
    $region2: #{tpu_custom_call.1} parent=1 // loop_pre_header
      _
    $region3: #{tpu_custom_call.1} parent=1 // loop_header
      %s14 = sphi 0, %s18
      %p15 = scmp.ge.s32.totalorder %s14, 4
      %s24 = sphi 0, %s26
      %s27 = sphi 0, %s24
      %s28 = sphi 0, %s27
      %s44 = sphi 0, %s28
      %s48 = sphi 0, %s48
      %s50 = sphi 0, %s48
      %s51 = sphi 0, %s50
      %s65 = sphi 0, %s51
      %s69 = sphi 0, %s69
      %s71 = sphi 0, %s69
      %s72 = sphi 0, %s71
      %s86 = sphi 0, %s72
      %s90 = sphi 0, %s90
      %s92 = sphi 0, %s90
      %s93 = sphi 0, %s92
      %s107 = sphi 0, %s93
      %s111 = sphi 0, %s111
      %s113 = sphi 0, %s111
      %s114 = sphi 0, %s113
      %s128 = sphi 0, %s114
      %s134 = sphi 0, %s136
      %s137 = sphi 0, %s134
      %s138 = sphi 0, %s137
      %s154 = sphi 0, %s138
    $region4: #{tpu_custom_call.1} parent=1 // loop_header_branch
      %17 = sbr.rel (%p15) target = $region8
    $region5: #{tpu_custom_call.1} parent=1 // loop_body
      %s19 = ssub.s32 %s14, 1
      %s20 = ssub.s32 %s14, 2
      %s21 = sadd.s32 %s14, 1
      %s22 = ssub.s32 %s14, %s21
      %p23 = scmp.eq.s32.totalorder %s22, 0
      %s25 = sadd.s32 %s24, 1
      %s26 = scalar_select %p23, %s24, %s25
      %p29 = pneg %p23
      %p30 = scmp.eq.s32.totalorder %s14, 1
      %p31 = por %p29, %p30
      %p32 = scmp.ne.s32.totalorder %s24, %s27
      %p33 = scmp.eq.s32.totalorder %s14, 0
      %p34 = por %p32, %p33
      %p35 = scmp.ne.s32.totalorder %s24, %s27
      %p36 = scmp.eq.s32.totalorder %s19, 1
      %p37 = por %p35, %p36
      %p38 = scmp.ne.s32.totalorder %s27, %s28
      %p39 = scmp.eq.s32.totalorder %s19, 0
      %p40 = por %p38, %p39
      %p41 = scmp.ne.s32.totalorder %s27, %s28
      %p42 = scmp.eq.s32.totalorder %s20, 1
      %p43 = por %p41, %p42
      %p45 = scmp.ne.s32.totalorder %s28, %s44
      %p46 = scmp.eq.s32.totalorder %s20, 0
      %p47 = por %p45, %p46
      %s49 = sadd.s32 %s48, 1
      %p52 = scmp.eq.s32.totalorder %s14, 1
      %p53 = scmp.ne.s32.totalorder %s48, %s50
      %p54 = scmp.eq.s32.totalorder %s14, 0
      %p55 = por %p53, %p54
      %p56 = scmp.ne.s32.totalorder %s48, %s50
      %p57 = scmp.eq.s32.totalorder %s19, 1
      %p58 = por %p56, %p57
      %p59 = scmp.ne.s32.totalorder %s50, %s51
      %p60 = scmp.eq.s32.totalorder %s19, 0
      %p61 = por %p59, %p60
      %p62 = scmp.ne.s32.totalorder %s50, %s51
      %p63 = scmp.eq.s32.totalorder %s20, 1
      %p64 = por %p62, %p63
      %p66 = scmp.ne.s32.totalorder %s51, %s65
      %p67 = scmp.eq.s32.totalorder %s20, 0
      %p68 = por %p66, %p67
      %s70 = sadd.s32 %s69, 1
      %p73 = scmp.eq.s32.totalorder %s14, 1
      %p74 = scmp.ne.s32.totalorder %s69, %s71
      %p75 = scmp.eq.s32.totalorder %s14, 0
      %p76 = por %p74, %p75
      %p77 = scmp.ne.s32.totalorder %s69, %s71
      %p78 = scmp.eq.s32.totalorder %s19, 1
      %p79 = por %p77, %p78
      %p80 = scmp.ne.s32.totalorder %s71, %s72
      %p81 = scmp.eq.s32.totalorder %s19, 0
      %p82 = por %p80, %p81
      %p83 = scmp.ne.s32.totalorder %s71, %s72
      %p84 = scmp.eq.s32.totalorder %s20, 1
      %p85 = por %p83, %p84
      %p87 = scmp.ne.s32.totalorder %s72, %s86
      %p88 = scmp.eq.s32.totalorder %s20, 0
      %p89 = por %p87, %p88
      %s91 = sadd.s32 %s90, 1
      %p94 = scmp.eq.s32.totalorder %s14, 1
      %p95 = scmp.ne.s32.totalorder %s90, %s92
      %p96 = scmp.eq.s32.totalorder %s14, 0
      %p97 = por %p95, %p96
      %p98 = scmp.ne.s32.totalorder %s90, %s92
      %p99 = scmp.eq.s32.totalorder %s19, 1
      %p100 = por %p98, %p99
      %p101 = scmp.ne.s32.totalorder %s92, %s93
      %p102 = scmp.eq.s32.totalorder %s19, 0
      %p103 = por %p101, %p102
      %p104 = scmp.ne.s32.totalorder %s92, %s93
      %p105 = scmp.eq.s32.totalorder %s20, 1
      %p106 = por %p104, %p105
      %p108 = scmp.ne.s32.totalorder %s93, %s107
      %p109 = scmp.eq.s32.totalorder %s20, 0
      %p110 = por %p108, %p109
      %s112 = sadd.s32 %s111, 1
      %p115 = scmp.eq.s32.totalorder %s14, 1
      %p116 = scmp.ne.s32.totalorder %s111, %s113
      %p117 = scmp.eq.s32.totalorder %s14, 0
      %p118 = por %p116, %p117
      %p119 = scmp.ne.s32.totalorder %s111, %s113
      %p120 = scmp.eq.s32.totalorder %s19, 1
      %p121 = por %p119, %p120
      %p122 = scmp.ne.s32.totalorder %s113, %s114
      %p123 = scmp.eq.s32.totalorder %s19, 0
      %p124 = por %p122, %p123
      %p125 = scmp.ne.s32.totalorder %s113, %s114
      %p126 = scmp.eq.s32.totalorder %s20, 1
      %p127 = por %p125, %p126
      %p129 = scmp.ne.s32.totalorder %s114, %s128
      %p130 = scmp.eq.s32.totalorder %s20, 0
      %p131 = por %p129, %p130
      %s132 = ssub.s32 %s14, %s21
      %p133 = scmp.eq.s32.totalorder %s132, 0
      %s135 = sadd.s32 %s134, 1
      %s136 = scalar_select %p133, %s134, %s135
      %p139 = pneg %p133
      %p140 = scmp.eq.s32.totalorder %s14, 1
      %p141 = por %p139, %p140
      %p142 = scmp.ne.s32.totalorder %s134, %s137
      %p143 = scmp.eq.s32.totalorder %s14, 0
      %p144 = por %p142, %p143
      %p145 = scmp.ne.s32.totalorder %s134, %s137
      %p146 = scmp.eq.s32.totalorder %s19, 1
      %p147 = por %p145, %p146
      %p148 = scmp.ne.s32.totalorder %s137, %s138
      %p149 = scmp.eq.s32.totalorder %s19, 0
      %p150 = por %p148, %p149
      %p151 = scmp.ne.s32.totalorder %s137, %s138
      %p152 = scmp.eq.s32.totalorder %s20, 1
      %p153 = por %p151, %p152
      %p155 = scmp.ne.s32.totalorder %s138, %s154
      %p156 = scmp.eq.s32.totalorder %s20, 0
      %p157 = por %p155, %p156
      %p158 = scmp.le.s32.totalorder 1, %s14
      %p159 = scmp.lt.s32.totalorder %s14, 3
      %p160 = pnand %p158, %p159
      %p161 = pneg %p160
      // Predicated region
      $region9: #{tpu_custom_call.1} parent=5 // pred_check
        _
      $region10: #{tpu_custom_call.1} parent=5 // pred_check_branch
        %163 = sbr.rel (%p160) target = $region12
      $region11: #{tpu_custom_call.1} parent=5 // pred_region
        %s164 = ssub.s32 %s14, 1
        // Predicated region
        $region13: #{tpu_custom_call.1} parent=11 // pred_check
          %p165 = pneg %p61
        $region14: #{tpu_custom_call.1} parent=11 // pred_check_branch
          %167 = sbr.rel (%p165) target = $region16
        $region15: #{tpu_custom_call.1} parent=11 // pred_region
          _
        $region16: #{tpu_custom_call.1} parent=11 // pred_fallthru
          _
        // Predicated region
        $region17: #{tpu_custom_call.1} parent=11 // pred_check
          %p168 = pneg %p82
        $region18: #{tpu_custom_call.1} parent=11 // pred_check_branch
          %170 = sbr.rel (%p168) target = $region20
        $region19: #{tpu_custom_call.1} parent=11 // pred_region
          _
        $region20: #{tpu_custom_call.1} parent=11 // pred_fallthru
          _
        // Predicated region
        $region21: #{tpu_custom_call.1} parent=11 // pred_check
          %p171 = pneg %p103
        $region22: #{tpu_custom_call.1} parent=11 // pred_check_branch
          %173 = sbr.rel (%p171) target = $region24
        $region23: #{tpu_custom_call.1} parent=11 // pred_region
          _
        $region24: #{tpu_custom_call.1} parent=11 // pred_fallthru
          _
        // Predicated region
        $region25: #{tpu_custom_call.1} parent=11 // pred_check
          %p174 = pneg %p124
        $region26: #{tpu_custom_call.1} parent=11 // pred_check_branch
          %176 = sbr.rel (%p174) target = $region28
        $region27: #{tpu_custom_call.1} parent=11 // pred_region
          _
        $region28: #{tpu_custom_call.1} parent=11 // pred_fallthru
          _
      $region12: #{tpu_custom_call.1} parent=5 // pred_fallthru
        _
      %p177 = scmp.lt.s32.totalorder %s14, 2
      // Predicated region
      $region29: #{tpu_custom_call.1} parent=5 // pred_check
        %p178 = pneg %p177
      $region30: #{tpu_custom_call.1} parent=5 // pred_check_branch
        %180 = sbr.rel (%p178) target = $region32
      $region31: #{tpu_custom_call.1} parent=5 // pred_region
        // Predicated region
        $region33: #{tpu_custom_call.1} parent=31 // pred_check
          %p181 = pneg %p34
        $region34: #{tpu_custom_call.1} parent=31 // pred_check_branch
          %183 = sbr.rel (%p181) target = $region36
        $region35: #{tpu_custom_call.1} parent=31 // pred_region
          %p184 = scmp.lt.s32.totalorder %s14, 1
          %s185 = scalar_select %p184, %s14, 1
          %s186 = smul.addr %s185, 384
          %s187 = smul.addr %s186, 8
          %s188 = scalar_lea.vmem %s0, %s187
        $region36: #{tpu_custom_call.1} parent=31 // pred_fallthru
          _
      $region32: #{tpu_custom_call.1} parent=5 // pred_fallthru
        _
      %p189 = scmp.le.s32.totalorder 1, %s14
      %p190 = scmp.lt.s32.totalorder %s14, 3
      %p191 = pnand %p189, %p190
      %p192 = pneg %p191
      // Predicated region
      $region37: #{tpu_custom_call.1} parent=5 // pred_check
        _
      $region38: #{tpu_custom_call.1} parent=5 // pred_check_branch
        %194 = sbr.rel (%p191) target = $region40
      $region39: #{tpu_custom_call.1} parent=5 // pred_region
        %s195 = ssub.s32 %s14, 1
        %p196 = scmp.lt.s32.totalorder %s19, 1
        %s197 = scalar_select %p196, %s19, 1
        %s198 = smul.addr %s197, 384
        %s199 = smul.addr %s198, 8
        %s200 = scalar_lea.vmem %s0, %s199
        %p201 = pneg %p40
        %p202 = pneg %p37
        %p203 = pneg %p61
        %p204 = pneg %p58
        %p205 = pneg %p82
        %p206 = pneg %p79
        %p207 = pneg %p103
        %p208 = pneg %p100
        %p209 = pneg %p124
        %p210 = pneg %p121
        %p211 = pneg %p150
        %p212 = pneg %p147
        %s213 = sand.u32 %s137, 1
        %s214 = scalar_lea.sflag [#allocation3], %s213
        %s215 = sand.u32 %s137, 1
        %s216 = scalar_lea.vmem [#allocation2], %s215
        %p217 = scmp.lt.s32.totalorder %s19, 1
        %s218 = scalar_select %p217, %s19, 1
        %s219 = smul.addr %s218, 384
        %s220 = smul.addr %s219, 8
        %s221 = scalar_lea.vmem %s0, %s220
        %v222 = vld [vmem:[%s221] sm:$0xff]
        %v223 = vld [vmem:[%s221 + $0x8] sm:$0xff]
        %v224 = vld [vmem:[%s221 + $0x10] sm:$0xff]
        %v225 = vld [vmem:[%s221 + $0x18] sm:$0xff]
        %v226 = vld [vmem:[%s221 + $0x20] sm:$0xff]
        %v227 = vld [vmem:[%s221 + $0x28] sm:$0xff]
        %v228 = vld [vmem:[%s221 + $0x30] sm:$0xff]
        %v229 = vld [vmem:[%s221 + $0x38] sm:$0xff]
        %v230 = vld [vmem:[%s221 + $0x40] sm:$0xff]
        %v231 = vld [vmem:[%s221 + $0x48] sm:$0xff]
        %v232 = vld [vmem:[%s221 + $0x50] sm:$0xff]
        %v233 = vld [vmem:[%s221 + $0x58] sm:$0xff]
        %v234 = vld [vmem:[%s221 + $0x60] sm:$0xff]
        %v235 = vld [vmem:[%s221 + $0x68] sm:$0xff]
        %v236 = vld [vmem:[%s221 + $0x70] sm:$0xff]
        %v237 = vld [vmem:[%s221 + $0x78] sm:$0xff]
        %v238 = vld [vmem:[%s221 + $0x80] sm:$0xff]
        %v239 = vld [vmem:[%s221 + $0x88] sm:$0xff]
        %v240 = vld [vmem:[%s221 + $0x90] sm:$0xff]
        %v241 = vld [vmem:[%s221 + $0x98] sm:$0xff]
        %v242 = vld [vmem:[%s221 + $0xa0] sm:$0xff]
        %v243 = vld [vmem:[%s221 + $0xa8] sm:$0xff]
        %v244 = vld [vmem:[%s221 + $0xb0] sm:$0xff]
        %v245 = vld [vmem:[%s221 + $0xb8] sm:$0xff]
        %v246 = vld [vmem:[%s221 + $0xc0] sm:$0xff]
        %v247 = vld [vmem:[%s221 + $0xc8] sm:$0xff]
        %v248 = vld [vmem:[%s221 + $0xd0] sm:$0xff]
        %v249 = vld [vmem:[%s221 + $0xd8] sm:$0xff]
        %v250 = vld [vmem:[%s221 + $0xe0] sm:$0xff]
        %v251 = vld [vmem:[%s221 + $0xe8] sm:$0xff]
        %v252 = vld [vmem:[%s221 + $0xf0] sm:$0xff]
        %v253 = vld [vmem:[%s221 + $0xf8] sm:$0xff]
        %v254 = vld [vmem:[%s221 + $0x100] sm:$0xff]
        %v255 = vld [vmem:[%s221 + $0x108] sm:$0xff]
        %v256 = vld [vmem:[%s221 + $0x110] sm:$0xff]
        %v257 = vld [vmem:[%s221 + $0x118] sm:$0xff]
        %v258 = vld [vmem:[%s221 + $0x120] sm:$0xff]
        %v259 = vld [vmem:[%s221 + $0x128] sm:$0xff]
        %v260 = vld [vmem:[%s221 + $0x130] sm:$0xff]
        %v261 = vld [vmem:[%s221 + $0x138] sm:$0xff]
        %v262 = vld [vmem:[%s221 + $0x140] sm:$0xff]
        %v263 = vld [vmem:[%s221 + $0x148] sm:$0xff]
        %v264 = vld [vmem:[%s221 + $0x150] sm:$0xff]
        %v265 = vld [vmem:[%s221 + $0x158] sm:$0xff]
        %v266 = vld [vmem:[%s221 + $0x160] sm:$0xff]
        %v267 = vld [vmem:[%s221 + $0x168] sm:$0xff]
        %v268 = vld [vmem:[%s221 + $0x170] sm:$0xff]
        %v269 = vld [vmem:[%s221 + $0x178] sm:$0xff]
        %v270 = vld [vmem:[%s221 + $0x180] sm:$0xff]
        %v271 = vld [vmem:[%s221 + $0x188] sm:$0xff]
        %v272 = vld [vmem:[%s221 + $0x190] sm:$0xff]
        %v273 = vld [vmem:[%s221 + $0x198] sm:$0xff]
        %v274 = vld [vmem:[%s221 + $0x1a0] sm:$0xff]
        %v275 = vld [vmem:[%s221 + $0x1a8] sm:$0xff]
        %v276 = vld [vmem:[%s221 + $0x1b0] sm:$0xff]
        %v277 = vld [vmem:[%s221 + $0x1b8] sm:$0xff]
        %v278 = vld [vmem:[%s221 + $0x1c0] sm:$0xff]
        %v279 = vld [vmem:[%s221 + $0x1c8] sm:$0xff]
        %v280 = vld [vmem:[%s221 + $0x1d0] sm:$0xff]
        %v281 = vld [vmem:[%s221 + $0x1d8] sm:$0xff]
        %v282 = vld [vmem:[%s221 + $0x1e0] sm:$0xff]
        %v283 = vld [vmem:[%s221 + $0x1e8] sm:$0xff]
        %v284 = vld [vmem:[%s221 + $0x1f0] sm:$0xff]
        %v285 = vld [vmem:[%s221 + $0x1f8] sm:$0xff]
        %v286 = vld [vmem:[%s221 + $0x200] sm:$0xff]
        %v287 = vld [vmem:[%s221 + $0x208] sm:$0xff]
        %v288 = vld [vmem:[%s221 + $0x210] sm:$0xff]
        %v289 = vld [vmem:[%s221 + $0x218] sm:$0xff]
        %v290 = vld [vmem:[%s221 + $0x220] sm:$0xff]
        %v291 = vld [vmem:[%s221 + $0x228] sm:$0xff]
        %v292 = vld [vmem:[%s221 + $0x230] sm:$0xff]
        %v293 = vld [vmem:[%s221 + $0x238] sm:$0xff]
        %v294 = vld [vmem:[%s221 + $0x240] sm:$0xff]
        %v295 = vld [vmem:[%s221 + $0x248] sm:$0xff]
        %v296 = vld [vmem:[%s221 + $0x250] sm:$0xff]
        %v297 = vld [vmem:[%s221 + $0x258] sm:$0xff]
        %v298 = vld [vmem:[%s221 + $0x260] sm:$0xff]
        %v299 = vld [vmem:[%s221 + $0x268] sm:$0xff]
        %v300 = vld [vmem:[%s221 + $0x270] sm:$0xff]
        %v301 = vld [vmem:[%s221 + $0x278] sm:$0xff]
        %v302 = vld [vmem:[%s221 + $0x280] sm:$0xff]
        %v303 = vld [vmem:[%s221 + $0x288] sm:$0xff]
        %v304 = vld [vmem:[%s221 + $0x290] sm:$0xff]
        %v305 = vld [vmem:[%s221 + $0x298] sm:$0xff]
        %v306 = vld [vmem:[%s221 + $0x2a0] sm:$0xff]
        %v307 = vld [vmem:[%s221 + $0x2a8] sm:$0xff]
        %v308 = vld [vmem:[%s221 + $0x2b0] sm:$0xff]
        %v309 = vld [vmem:[%s221 + $0x2b8] sm:$0xff]
        %v310 = vld [vmem:[%s221 + $0x2c0] sm:$0xff]
        %v311 = vld [vmem:[%s221 + $0x2c8] sm:$0xff]
        %v312 = vld [vmem:[%s221 + $0x2d0] sm:$0xff]
        %v313 = vld [vmem:[%s221 + $0x2d8] sm:$0xff]
        %v314 = vld [vmem:[%s221 + $0x2e0] sm:$0xff]
        %v315 = vld [vmem:[%s221 + $0x2e8] sm:$0xff]
        %v316 = vld [vmem:[%s221 + $0x2f0] sm:$0xff]
        %v317 = vld [vmem:[%s221 + $0x2f8] sm:$0xff]
        %v318 = vld [vmem:[%s221 + $0x300] sm:$0xff]
        %v319 = vld [vmem:[%s221 + $0x308] sm:$0xff]
        %v320 = vld [vmem:[%s221 + $0x310] sm:$0xff]
        %v321 = vld [vmem:[%s221 + $0x318] sm:$0xff]
        %v322 = vld [vmem:[%s221 + $0x320] sm:$0xff]
        %v323 = vld [vmem:[%s221 + $0x328] sm:$0xff]
        %v324 = vld [vmem:[%s221 + $0x330] sm:$0xff]
        %v325 = vld [vmem:[%s221 + $0x338] sm:$0xff]
        %v326 = vld [vmem:[%s221 + $0x340] sm:$0xff]
        %v327 = vld [vmem:[%s221 + $0x348] sm:$0xff]
        %v328 = vld [vmem:[%s221 + $0x350] sm:$0xff]
        %v329 = vld [vmem:[%s221 + $0x358] sm:$0xff]
        %v330 = vld [vmem:[%s221 + $0x360] sm:$0xff]
        %v331 = vld [vmem:[%s221 + $0x368] sm:$0xff]
        %v332 = vld [vmem:[%s221 + $0x370] sm:$0xff]
        %v333 = vld [vmem:[%s221 + $0x378] sm:$0xff]
        %v334 = vld [vmem:[%s221 + $0x380] sm:$0xff]
        %v335 = vld [vmem:[%s221 + $0x388] sm:$0xff]
        %v336 = vld [vmem:[%s221 + $0x390] sm:$0xff]
        %v337 = vld [vmem:[%s221 + $0x398] sm:$0xff]
        %v338 = vld [vmem:[%s221 + $0x3a0] sm:$0xff]
        %v339 = vld [vmem:[%s221 + $0x3a8] sm:$0xff]
        %v340 = vld [vmem:[%s221 + $0x3b0] sm:$0xff]
        %v341 = vld [vmem:[%s221 + $0x3b8] sm:$0xff]
        %v342 = vld [vmem:[%s221 + $0x3c0] sm:$0xff]
        %v343 = vld [vmem:[%s221 + $0x3c8] sm:$0xff]
        %v344 = vld [vmem:[%s221 + $0x3d0] sm:$0xff]
        %v345 = vld [vmem:[%s221 + $0x3d8] sm:$0xff]
        %v346 = vld [vmem:[%s221 + $0x3e0] sm:$0xff]
        %v347 = vld [vmem:[%s221 + $0x3e8] sm:$0xff]
        %v348 = vld [vmem:[%s221 + $0x3f0] sm:$0xff]
        %v349 = vld [vmem:[%s221 + $0x3f8] sm:$0xff]
        %v350 = vld [vmem:[%s221 + $0x400] sm:$0xff]
        %v351 = vld [vmem:[%s221 + $0x408] sm:$0xff]
        %v352 = vld [vmem:[%s221 + $0x410] sm:$0xff]
        %v353 = vld [vmem:[%s221 + $0x418] sm:$0xff]
        %v354 = vld [vmem:[%s221 + $0x420] sm:$0xff]
        %v355 = vld [vmem:[%s221 + $0x428] sm:$0xff]
        %v356 = vld [vmem:[%s221 + $0x430] sm:$0xff]
        %v357 = vld [vmem:[%s221 + $0x438] sm:$0xff]
        %v358 = vld [vmem:[%s221 + $0x440] sm:$0xff]
        %v359 = vld [vmem:[%s221 + $0x448] sm:$0xff]
        %v360 = vld [vmem:[%s221 + $0x450] sm:$0xff]
        %v361 = vld [vmem:[%s221 + $0x458] sm:$0xff]
        %v362 = vld [vmem:[%s221 + $0x460] sm:$0xff]
        %v363 = vld [vmem:[%s221 + $0x468] sm:$0xff]
        %v364 = vld [vmem:[%s221 + $0x470] sm:$0xff]
        %v365 = vld [vmem:[%s221 + $0x478] sm:$0xff]
        %v366 = vld [vmem:[%s221 + $0x480] sm:$0xff]
        %v367 = vld [vmem:[%s221 + $0x488] sm:$0xff]
        %v368 = vld [vmem:[%s221 + $0x490] sm:$0xff]
        %v369 = vld [vmem:[%s221 + $0x498] sm:$0xff]
        %v370 = vld [vmem:[%s221 + $0x4a0] sm:$0xff]
        %v371 = vld [vmem:[%s221 + $0x4a8] sm:$0xff]
        %v372 = vld [vmem:[%s221 + $0x4b0] sm:$0xff]
        %v373 = vld [vmem:[%s221 + $0x4b8] sm:$0xff]
        %v374 = vld [vmem:[%s221 + $0x4c0] sm:$0xff]
        %v375 = vld [vmem:[%s221 + $0x4c8] sm:$0xff]
        %v376 = vld [vmem:[%s221 + $0x4d0] sm:$0xff]
        %v377 = vld [vmem:[%s221 + $0x4d8] sm:$0xff]
        %v378 = vld [vmem:[%s221 + $0x4e0] sm:$0xff]
        %v379 = vld [vmem:[%s221 + $0x4e8] sm:$0xff]
        %v380 = vld [vmem:[%s221 + $0x4f0] sm:$0xff]
        %v381 = vld [vmem:[%s221 + $0x4f8] sm:$0xff]
        %v382 = vld [vmem:[%s221 + $0x500] sm:$0xff]
        %v383 = vld [vmem:[%s221 + $0x508] sm:$0xff]
        %v384 = vld [vmem:[%s221 + $0x510] sm:$0xff]
        %v385 = vld [vmem:[%s221 + $0x518] sm:$0xff]
        %v386 = vld [vmem:[%s221 + $0x520] sm:$0xff]
        %v387 = vld [vmem:[%s221 + $0x528] sm:$0xff]
        %v388 = vld [vmem:[%s221 + $0x530] sm:$0xff]
        %v389 = vld [vmem:[%s221 + $0x538] sm:$0xff]
        %v390 = vld [vmem:[%s221 + $0x540] sm:$0xff]
        %v391 = vld [vmem:[%s221 + $0x548] sm:$0xff]
        %v392 = vld [vmem:[%s221 + $0x550] sm:$0xff]
        %v393 = vld [vmem:[%s221 + $0x558] sm:$0xff]
        %v394 = vld [vmem:[%s221 + $0x560] sm:$0xff]
        %v395 = vld [vmem:[%s221 + $0x568] sm:$0xff]
        %v396 = vld [vmem:[%s221 + $0x570] sm:$0xff]
        %v397 = vld [vmem:[%s221 + $0x578] sm:$0xff]
        %v398 = vld [vmem:[%s221 + $0x580] sm:$0xff]
        %v399 = vld [vmem:[%s221 + $0x588] sm:$0xff]
        %v400 = vld [vmem:[%s221 + $0x590] sm:$0xff]
        %v401 = vld [vmem:[%s221 + $0x598] sm:$0xff]
        %v402 = vld [vmem:[%s221 + $0x5a0] sm:$0xff]
        %v403 = vld [vmem:[%s221 + $0x5a8] sm:$0xff]
        %v404 = vld [vmem:[%s221 + $0x5b0] sm:$0xff]
        %v405 = vld [vmem:[%s221 + $0x5b8] sm:$0xff]
        %v406 = vld [vmem:[%s221 + $0x5c0] sm:$0xff]
        %v407 = vld [vmem:[%s221 + $0x5c8] sm:$0xff]
        %v408 = vld [vmem:[%s221 + $0x5d0] sm:$0xff]
        %v409 = vld [vmem:[%s221 + $0x5d8] sm:$0xff]
        %v410 = vld [vmem:[%s221 + $0x5e0] sm:$0xff]
        %v411 = vld [vmem:[%s221 + $0x5e8] sm:$0xff]
        %v412 = vld [vmem:[%s221 + $0x5f0] sm:$0xff]
        %v413 = vld [vmem:[%s221 + $0x5f8] sm:$0xff]
        %v414 = vld [vmem:[%s221 + $0x600] sm:$0xff]
        %v415 = vld [vmem:[%s221 + $0x608] sm:$0xff]
        %v416 = vld [vmem:[%s221 + $0x610] sm:$0xff]
        %v417 = vld [vmem:[%s221 + $0x618] sm:$0xff]
        %v418 = vld [vmem:[%s221 + $0x620] sm:$0xff]
        %v419 = vld [vmem:[%s221 + $0x628] sm:$0xff]
        %v420 = vld [vmem:[%s221 + $0x630] sm:$0xff]
        %v421 = vld [vmem:[%s221 + $0x638] sm:$0xff]
        %v422 = vld [vmem:[%s221 + $0x640] sm:$0xff]
        %v423 = vld [vmem:[%s221 + $0x648] sm:$0xff]
        %v424 = vld [vmem:[%s221 + $0x650] sm:$0xff]
        %v425 = vld [vmem:[%s221 + $0x658] sm:$0xff]
        %v426 = vld [vmem:[%s221 + $0x660] sm:$0xff]
        %v427 = vld [vmem:[%s221 + $0x668] sm:$0xff]
        %v428 = vld [vmem:[%s221 + $0x670] sm:$0xff]
        %v429 = vld [vmem:[%s221 + $0x678] sm:$0xff]
        %v430 = vld [vmem:[%s221 + $0x680] sm:$0xff]
        %v431 = vld [vmem:[%s221 + $0x688] sm:$0xff]
        %v432 = vld [vmem:[%s221 + $0x690] sm:$0xff]
        %v433 = vld [vmem:[%s221 + $0x698] sm:$0xff]
        %v434 = vld [vmem:[%s221 + $0x6a0] sm:$0xff]
        %v435 = vld [vmem:[%s221 + $0x6a8] sm:$0xff]
        %v436 = vld [vmem:[%s221 + $0x6b0] sm:$0xff]
        %v437 = vld [vmem:[%s221 + $0x6b8] sm:$0xff]
        %v438 = vld [vmem:[%s221 + $0x6c0] sm:$0xff]
        %v439 = vld [vmem:[%s221 + $0x6c8] sm:$0xff]
        %v440 = vld [vmem:[%s221 + $0x6d0] sm:$0xff]
        %v441 = vld [vmem:[%s221 + $0x6d8] sm:$0xff]
        %v442 = vld [vmem:[%s221 + $0x6e0] sm:$0xff]
        %v443 = vld [vmem:[%s221 + $0x6e8] sm:$0xff]
        %v444 = vld [vmem:[%s221 + $0x6f0] sm:$0xff]
        %v445 = vld [vmem:[%s221 + $0x6f8] sm:$0xff]
        %v446 = vld [vmem:[%s221 + $0x700] sm:$0xff]
        %v447 = vld [vmem:[%s221 + $0x708] sm:$0xff]
        %v448 = vld [vmem:[%s221 + $0x710] sm:$0xff]
        %v449 = vld [vmem:[%s221 + $0x718] sm:$0xff]
        %v450 = vld [vmem:[%s221 + $0x720] sm:$0xff]
        %v451 = vld [vmem:[%s221 + $0x728] sm:$0xff]
        %v452 = vld [vmem:[%s221 + $0x730] sm:$0xff]
        %v453 = vld [vmem:[%s221 + $0x738] sm:$0xff]
        %v454 = vld [vmem:[%s221 + $0x740] sm:$0xff]
        %v455 = vld [vmem:[%s221 + $0x748] sm:$0xff]
        %v456 = vld [vmem:[%s221 + $0x750] sm:$0xff]
        %v457 = vld [vmem:[%s221 + $0x758] sm:$0xff]
        %v458 = vld [vmem:[%s221 + $0x760] sm:$0xff]
        %v459 = vld [vmem:[%s221 + $0x768] sm:$0xff]
        %v460 = vld [vmem:[%s221 + $0x770] sm:$0xff]
        %v461 = vld [vmem:[%s221 + $0x778] sm:$0xff]
        %v462 = vld [vmem:[%s221 + $0x780] sm:$0xff]
        %v463 = vld [vmem:[%s221 + $0x788] sm:$0xff]
        %v464 = vld [vmem:[%s221 + $0x790] sm:$0xff]
        %v465 = vld [vmem:[%s221 + $0x798] sm:$0xff]
        %v466 = vld [vmem:[%s221 + $0x7a0] sm:$0xff]
        %v467 = vld [vmem:[%s221 + $0x7a8] sm:$0xff]
        %v468 = vld [vmem:[%s221 + $0x7b0] sm:$0xff]
        %v469 = vld [vmem:[%s221 + $0x7b8] sm:$0xff]
        %v470 = vld [vmem:[%s221 + $0x7c0] sm:$0xff]
        %v471 = vld [vmem:[%s221 + $0x7c8] sm:$0xff]
        %v472 = vld [vmem:[%s221 + $0x7d0] sm:$0xff]
        %v473 = vld [vmem:[%s221 + $0x7d8] sm:$0xff]
        %v474 = vld [vmem:[%s221 + $0x7e0] sm:$0xff]
        %v475 = vld [vmem:[%s221 + $0x7e8] sm:$0xff]
        %v476 = vld [vmem:[%s221 + $0x7f0] sm:$0xff]
        %v477 = vld [vmem:[%s221 + $0x7f8] sm:$0xff]
        %v478 = vld [vmem:[%s221 + $0x800] sm:$0xff]
        %v479 = vld [vmem:[%s221 + $0x808] sm:$0xff]
        %v480 = vld [vmem:[%s221 + $0x810] sm:$0xff]
        %v481 = vld [vmem:[%s221 + $0x818] sm:$0xff]
        %v482 = vld [vmem:[%s221 + $0x820] sm:$0xff]
        %v483 = vld [vmem:[%s221 + $0x828] sm:$0xff]
        %v484 = vld [vmem:[%s221 + $0x830] sm:$0xff]
        %v485 = vld [vmem:[%s221 + $0x838] sm:$0xff]
        %v486 = vld [vmem:[%s221 + $0x840] sm:$0xff]
        %v487 = vld [vmem:[%s221 + $0x848] sm:$0xff]
        %v488 = vld [vmem:[%s221 + $0x850] sm:$0xff]
        %v489 = vld [vmem:[%s221 + $0x858] sm:$0xff]
        %v490 = vld [vmem:[%s221 + $0x860] sm:$0xff]
        %v491 = vld [vmem:[%s221 + $0x868] sm:$0xff]
        %v492 = vld [vmem:[%s221 + $0x870] sm:$0xff]
        %v493 = vld [vmem:[%s221 + $0x878] sm:$0xff]
        %v494 = vld [vmem:[%s221 + $0x880] sm:$0xff]
        %v495 = vld [vmem:[%s221 + $0x888] sm:$0xff]
        %v496 = vld [vmem:[%s221 + $0x890] sm:$0xff]
        %v497 = vld [vmem:[%s221 + $0x898] sm:$0xff]
        %v498 = vld [vmem:[%s221 + $0x8a0] sm:$0xff]
        %v499 = vld [vmem:[%s221 + $0x8a8] sm:$0xff]
        %v500 = vld [vmem:[%s221 + $0x8b0] sm:$0xff]
        %v501 = vld [vmem:[%s221 + $0x8b8] sm:$0xff]
        %v502 = vld [vmem:[%s221 + $0x8c0] sm:$0xff]
        %v503 = vld [vmem:[%s221 + $0x8c8] sm:$0xff]
        %v504 = vld [vmem:[%s221 + $0x8d0] sm:$0xff]
        %v505 = vld [vmem:[%s221 + $0x8d8] sm:$0xff]
        %v506 = vld [vmem:[%s221 + $0x8e0] sm:$0xff]
        %v507 = vld [vmem:[%s221 + $0x8e8] sm:$0xff]
        %v508 = vld [vmem:[%s221 + $0x8f0] sm:$0xff]
        %v509 = vld [vmem:[%s221 + $0x8f8] sm:$0xff]
        %v510 = vld [vmem:[%s221 + $0x900] sm:$0xff]
        %v511 = vld [vmem:[%s221 + $0x908] sm:$0xff]
        %v512 = vld [vmem:[%s221 + $0x910] sm:$0xff]
        %v513 = vld [vmem:[%s221 + $0x918] sm:$0xff]
        %v514 = vld [vmem:[%s221 + $0x920] sm:$0xff]
        %v515 = vld [vmem:[%s221 + $0x928] sm:$0xff]
        %v516 = vld [vmem:[%s221 + $0x930] sm:$0xff]
        %v517 = vld [vmem:[%s221 + $0x938] sm:$0xff]
        %v518 = vld [vmem:[%s221 + $0x940] sm:$0xff]
        %v519 = vld [vmem:[%s221 + $0x948] sm:$0xff]
        %v520 = vld [vmem:[%s221 + $0x950] sm:$0xff]
        %v521 = vld [vmem:[%s221 + $0x958] sm:$0xff]
        %v522 = vld [vmem:[%s221 + $0x960] sm:$0xff]
        %v523 = vld [vmem:[%s221 + $0x968] sm:$0xff]
        %v524 = vld [vmem:[%s221 + $0x970] sm:$0xff]
        %v525 = vld [vmem:[%s221 + $0x978] sm:$0xff]
        %v526 = vld [vmem:[%s221 + $0x980] sm:$0xff]
        %v527 = vld [vmem:[%s221 + $0x988] sm:$0xff]
        %v528 = vld [vmem:[%s221 + $0x990] sm:$0xff]
        %v529 = vld [vmem:[%s221 + $0x998] sm:$0xff]
        %v530 = vld [vmem:[%s221 + $0x9a0] sm:$0xff]
        %v531 = vld [vmem:[%s221 + $0x9a8] sm:$0xff]
        %v532 = vld [vmem:[%s221 + $0x9b0] sm:$0xff]
        %v533 = vld [vmem:[%s221 + $0x9b8] sm:$0xff]
        %v534 = vld [vmem:[%s221 + $0x9c0] sm:$0xff]
        %v535 = vld [vmem:[%s221 + $0x9c8] sm:$0xff]
        %v536 = vld [vmem:[%s221 + $0x9d0] sm:$0xff]
        %v537 = vld [vmem:[%s221 + $0x9d8] sm:$0xff]
        %v538 = vld [vmem:[%s221 + $0x9e0] sm:$0xff]
        %v539 = vld [vmem:[%s221 + $0x9e8] sm:$0xff]
        %v540 = vld [vmem:[%s221 + $0x9f0] sm:$0xff]
        %v541 = vld [vmem:[%s221 + $0x9f8] sm:$0xff]
        %v542 = vld [vmem:[%s221 + $0xa00] sm:$0xff]
        %v543 = vld [vmem:[%s221 + $0xa08] sm:$0xff]
        %v544 = vld [vmem:[%s221 + $0xa10] sm:$0xff]
        %v545 = vld [vmem:[%s221 + $0xa18] sm:$0xff]
        %v546 = vld [vmem:[%s221 + $0xa20] sm:$0xff]
        %v547 = vld [vmem:[%s221 + $0xa28] sm:$0xff]
        %v548 = vld [vmem:[%s221 + $0xa30] sm:$0xff]
        %v549 = vld [vmem:[%s221 + $0xa38] sm:$0xff]
        %v550 = vld [vmem:[%s221 + $0xa40] sm:$0xff]
        %v551 = vld [vmem:[%s221 + $0xa48] sm:$0xff]
        %v552 = vld [vmem:[%s221 + $0xa50] sm:$0xff]
        %v553 = vld [vmem:[%s221 + $0xa58] sm:$0xff]
        %v554 = vld [vmem:[%s221 + $0xa60] sm:$0xff]
        %v555 = vld [vmem:[%s221 + $0xa68] sm:$0xff]
        %v556 = vld [vmem:[%s221 + $0xa70] sm:$0xff]
        %v557 = vld [vmem:[%s221 + $0xa78] sm:$0xff]
        %v558 = vld [vmem:[%s221 + $0xa80] sm:$0xff]
        %v559 = vld [vmem:[%s221 + $0xa88] sm:$0xff]
        %v560 = vld [vmem:[%s221 + $0xa90] sm:$0xff]
        %v561 = vld [vmem:[%s221 + $0xa98] sm:$0xff]
        %v562 = vld [vmem:[%s221 + $0xaa0] sm:$0xff]
        %v563 = vld [vmem:[%s221 + $0xaa8] sm:$0xff]
        %v564 = vld [vmem:[%s221 + $0xab0] sm:$0xff]
        %v565 = vld [vmem:[%s221 + $0xab8] sm:$0xff]
        %v566 = vld [vmem:[%s221 + $0xac0] sm:$0xff]
        %v567 = vld [vmem:[%s221 + $0xac8] sm:$0xff]
        %v568 = vld [vmem:[%s221 + $0xad0] sm:$0xff]
        %v569 = vld [vmem:[%s221 + $0xad8] sm:$0xff]
        %v570 = vld [vmem:[%s221 + $0xae0] sm:$0xff]
        %v571 = vld [vmem:[%s221 + $0xae8] sm:$0xff]
        %v572 = vld [vmem:[%s221 + $0xaf0] sm:$0xff]
        %v573 = vld [vmem:[%s221 + $0xaf8] sm:$0xff]
        %v574 = vld [vmem:[%s221 + $0xb00] sm:$0xff]
        %v575 = vld [vmem:[%s221 + $0xb08] sm:$0xff]
        %v576 = vld [vmem:[%s221 + $0xb10] sm:$0xff]
        %v577 = vld [vmem:[%s221 + $0xb18] sm:$0xff]
        %v578 = vld [vmem:[%s221 + $0xb20] sm:$0xff]
        %v579 = vld [vmem:[%s221 + $0xb28] sm:$0xff]
        %v580 = vld [vmem:[%s221 + $0xb30] sm:$0xff]
        %v581 = vld [vmem:[%s221 + $0xb38] sm:$0xff]
        %v582 = vld [vmem:[%s221 + $0xb40] sm:$0xff]
        %v583 = vld [vmem:[%s221 + $0xb48] sm:$0xff]
        %v584 = vld [vmem:[%s221 + $0xb50] sm:$0xff]
        %v585 = vld [vmem:[%s221 + $0xb58] sm:$0xff]
        %v586 = vld [vmem:[%s221 + $0xb60] sm:$0xff]
        %v587 = vld [vmem:[%s221 + $0xb68] sm:$0xff]
        %v588 = vld [vmem:[%s221 + $0xb70] sm:$0xff]
        %v589 = vld [vmem:[%s221 + $0xb78] sm:$0xff]
        %v590 = vld [vmem:[%s221 + $0xb80] sm:$0xff]
        %v591 = vld [vmem:[%s221 + $0xb88] sm:$0xff]
        %v592 = vld [vmem:[%s221 + $0xb90] sm:$0xff]
        %v593 = vld [vmem:[%s221 + $0xb98] sm:$0xff]
        %v594 = vld [vmem:[%s221 + $0xba0] sm:$0xff]
        %v595 = vld [vmem:[%s221 + $0xba8] sm:$0xff]
        %v596 = vld [vmem:[%s221 + $0xbb0] sm:$0xff]
        %v597 = vld [vmem:[%s221 + $0xbb8] sm:$0xff]
        %v598 = vld [vmem:[%s221 + $0xbc0] sm:$0xff]
        %v599 = vld [vmem:[%s221 + $0xbc8] sm:$0xff]
        %v600 = vld [vmem:[%s221 + $0xbd0] sm:$0xff]
        %v601 = vld [vmem:[%s221 + $0xbd8] sm:$0xff]
        %v602 = vld [vmem:[%s221 + $0xbe0] sm:$0xff]
        %v603 = vld [vmem:[%s221 + $0xbe8] sm:$0xff]
        %v604 = vld [vmem:[%s221 + $0xbf0] sm:$0xff]
        %v605 = vld [vmem:[%s221 + $0xbf8] sm:$0xff]
        %vm606 = vcmask 130048
        %v607 = vsel %vm606, %v222, 0.0
        %v608 = vsel %vm606, %v223, 0.0
        %v609 = vadd.f32 %v607, %v608
        %v610 = vrot.slane %v609, 4
        %v611 = vadd.f32 %v609, %v610
        %v612 = vrot.slane %v611, 2
        %v613 = vadd.f32 %v611, %v612
        %v614 = vrot.slane %v613, 1
        %v615 = vadd.f32 %v613, %v614
        %v616 = vsel %vm606, %v224, 0.0
        %v617 = vsel %vm606, %v225, 0.0
        %v618 = vadd.f32 %v616, %v617
        %v619 = vrot.slane %v618, 4
        %v620 = vadd.f32 %v618, %v619
        %v621 = vrot.slane %v620, 2
        %v622 = vadd.f32 %v620, %v621
        %v623 = vrot.slane %v622, 1
        %v624 = vadd.f32 %v622, %v623
        %v625 = vsel %vm606, %v226, 0.0
        %v626 = vsel %vm606, %v227, 0.0
        %v627 = vadd.f32 %v625, %v626
        %v628 = vrot.slane %v627, 4
        %v629 = vadd.f32 %v627, %v628
        %v630 = vrot.slane %v629, 2
        %v631 = vadd.f32 %v629, %v630
        %v632 = vrot.slane %v631, 1
        %v633 = vadd.f32 %v631, %v632
        %v634 = vsel %vm606, %v228, 0.0
        %v635 = vsel %vm606, %v229, 0.0
        %v636 = vadd.f32 %v634, %v635
        %v637 = vrot.slane %v636, 4
        %v638 = vadd.f32 %v636, %v637
        %v639 = vrot.slane %v638, 2
        %v640 = vadd.f32 %v638, %v639
        %v641 = vrot.slane %v640, 1
        %v642 = vadd.f32 %v640, %v641
        %v643 = vsel %vm606, %v230, 0.0
        %v644 = vsel %vm606, %v231, 0.0
        %v645 = vadd.f32 %v643, %v644
        %v646 = vrot.slane %v645, 4
        %v647 = vadd.f32 %v645, %v646
        %v648 = vrot.slane %v647, 2
        %v649 = vadd.f32 %v647, %v648
        %v650 = vrot.slane %v649, 1
        %v651 = vadd.f32 %v649, %v650
        %v652 = vsel %vm606, %v232, 0.0
        %v653 = vsel %vm606, %v233, 0.0
        %v654 = vadd.f32 %v652, %v653
        %v655 = vrot.slane %v654, 4
        %v656 = vadd.f32 %v654, %v655
        %v657 = vrot.slane %v656, 2
        %v658 = vadd.f32 %v656, %v657
        %v659 = vrot.slane %v658, 1
        %v660 = vadd.f32 %v658, %v659
        %v661 = vsel %vm606, %v234, 0.0
        %v662 = vsel %vm606, %v235, 0.0
        %v663 = vadd.f32 %v661, %v662
        %v664 = vrot.slane %v663, 4
        %v665 = vadd.f32 %v663, %v664
        %v666 = vrot.slane %v665, 2
        %v667 = vadd.f32 %v665, %v666
        %v668 = vrot.slane %v667, 1
        %v669 = vadd.f32 %v667, %v668
        %v670 = vsel %vm606, %v236, 0.0
        %v671 = vsel %vm606, %v237, 0.0
        %v672 = vadd.f32 %v670, %v671
        %v673 = vrot.slane %v672, 4
        %v674 = vadd.f32 %v672, %v673
        %v675 = vrot.slane %v674, 2
        %v676 = vadd.f32 %v674, %v675
        %v677 = vrot.slane %v676, 1
        %v678 = vadd.f32 %v676, %v677
        %v679 = vsel %vm606, %v238, 0.0
        %v680 = vsel %vm606, %v239, 0.0
        %v681 = vadd.f32 %v679, %v680
        %v682 = vrot.slane %v681, 4
        %v683 = vadd.f32 %v681, %v682
        %v684 = vrot.slane %v683, 2
        %v685 = vadd.f32 %v683, %v684
        %v686 = vrot.slane %v685, 1
        %v687 = vadd.f32 %v685, %v686
        %v688 = vsel %vm606, %v240, 0.0
        %v689 = vsel %vm606, %v241, 0.0
        %v690 = vadd.f32 %v688, %v689
        %v691 = vrot.slane %v690, 4
        %v692 = vadd.f32 %v690, %v691
        %v693 = vrot.slane %v692, 2
        %v694 = vadd.f32 %v692, %v693
        %v695 = vrot.slane %v694, 1
        %v696 = vadd.f32 %v694, %v695
        %v697 = vsel %vm606, %v242, 0.0
        %v698 = vsel %vm606, %v243, 0.0
        %v699 = vadd.f32 %v697, %v698
        %v700 = vrot.slane %v699, 4
        %v701 = vadd.f32 %v699, %v700
        %v702 = vrot.slane %v701, 2
        %v703 = vadd.f32 %v701, %v702
        %v704 = vrot.slane %v703, 1
        %v705 = vadd.f32 %v703, %v704
        %v706 = vsel %vm606, %v244, 0.0
        %v707 = vsel %vm606, %v245, 0.0
        %v708 = vadd.f32 %v706, %v707
        %v709 = vrot.slane %v708, 4
        %v710 = vadd.f32 %v708, %v709
        %v711 = vrot.slane %v710, 2
        %v712 = vadd.f32 %v710, %v711
        %v713 = vrot.slane %v712, 1
        %v714 = vadd.f32 %v712, %v713
        %v715 = vsel %vm606, %v246, 0.0
        %v716 = vsel %vm606, %v247, 0.0
        %v717 = vadd.f32 %v715, %v716
        %v718 = vrot.slane %v717, 4
        %v719 = vadd.f32 %v717, %v718
        %v720 = vrot.slane %v719, 2
        %v721 = vadd.f32 %v719, %v720
        %v722 = vrot.slane %v721, 1
        %v723 = vadd.f32 %v721, %v722
        %v724 = vsel %vm606, %v248, 0.0
        %v725 = vsel %vm606, %v249, 0.0
        %v726 = vadd.f32 %v724, %v725
        %v727 = vrot.slane %v726, 4
        %v728 = vadd.f32 %v726, %v727
        %v729 = vrot.slane %v728, 2
        %v730 = vadd.f32 %v728, %v729
        %v731 = vrot.slane %v730, 1
        %v732 = vadd.f32 %v730, %v731
        %v733 = vsel %vm606, %v250, 0.0
        %v734 = vsel %vm606, %v251, 0.0
        %v735 = vadd.f32 %v733, %v734
        %v736 = vrot.slane %v735, 4
        %v737 = vadd.f32 %v735, %v736
        %v738 = vrot.slane %v737, 2
        %v739 = vadd.f32 %v737, %v738
        %v740 = vrot.slane %v739, 1
        %v741 = vadd.f32 %v739, %v740
        %v742 = vsel %vm606, %v252, 0.0
        %v743 = vsel %vm606, %v253, 0.0
        %v744 = vadd.f32 %v742, %v743
        %v745 = vrot.slane %v744, 4
        %v746 = vadd.f32 %v744, %v745
        %v747 = vrot.slane %v746, 2
        %v748 = vadd.f32 %v746, %v747
        %v749 = vrot.slane %v748, 1
        %v750 = vadd.f32 %v748, %v749
        %v751 = vsel %vm606, %v254, 0.0
        %v752 = vsel %vm606, %v255, 0.0
        %v753 = vadd.f32 %v751, %v752
        %v754 = vrot.slane %v753, 4
        %v755 = vadd.f32 %v753, %v754
        %v756 = vrot.slane %v755, 2
        %v757 = vadd.f32 %v755, %v756
        %v758 = vrot.slane %v757, 1
        %v759 = vadd.f32 %v757, %v758
        %v760 = vsel %vm606, %v256, 0.0
        %v761 = vsel %vm606, %v257, 0.0
        %v762 = vadd.f32 %v760, %v761
        %v763 = vrot.slane %v762, 4
        %v764 = vadd.f32 %v762, %v763
        %v765 = vrot.slane %v764, 2
        %v766 = vadd.f32 %v764, %v765
        %v767 = vrot.slane %v766, 1
        %v768 = vadd.f32 %v766, %v767
        %v769 = vsel %vm606, %v258, 0.0
        %v770 = vsel %vm606, %v259, 0.0
        %v771 = vadd.f32 %v769, %v770
        %v772 = vrot.slane %v771, 4
        %v773 = vadd.f32 %v771, %v772
        %v774 = vrot.slane %v773, 2
        %v775 = vadd.f32 %v773, %v774
        %v776 = vrot.slane %v775, 1
        %v777 = vadd.f32 %v775, %v776
        %v778 = vsel %vm606, %v260, 0.0
        %v779 = vsel %vm606, %v261, 0.0
        %v780 = vadd.f32 %v778, %v779
        %v781 = vrot.slane %v780, 4
        %v782 = vadd.f32 %v780, %v781
        %v783 = vrot.slane %v782, 2
        %v784 = vadd.f32 %v782, %v783
        %v785 = vrot.slane %v784, 1
        %v786 = vadd.f32 %v784, %v785
        %v787 = vsel %vm606, %v262, 0.0
        %v788 = vsel %vm606, %v263, 0.0
        %v789 = vadd.f32 %v787, %v788
        %v790 = vrot.slane %v789, 4
        %v791 = vadd.f32 %v789, %v790
        %v792 = vrot.slane %v791, 2
        %v793 = vadd.f32 %v791, %v792
        %v794 = vrot.slane %v793, 1
        %v795 = vadd.f32 %v793, %v794
        %v796 = vsel %vm606, %v264, 0.0
        %v797 = vsel %vm606, %v265, 0.0
        %v798 = vadd.f32 %v796, %v797
        %v799 = vrot.slane %v798, 4
        %v800 = vadd.f32 %v798, %v799
        %v801 = vrot.slane %v800, 2
        %v802 = vadd.f32 %v800, %v801
        %v803 = vrot.slane %v802, 1
        %v804 = vadd.f32 %v802, %v803
        %v805 = vsel %vm606, %v266, 0.0
        %v806 = vsel %vm606, %v267, 0.0
        %v807 = vadd.f32 %v805, %v806
        %v808 = vrot.slane %v807, 4
        %v809 = vadd.f32 %v807, %v808
        %v810 = vrot.slane %v809, 2
        %v811 = vadd.f32 %v809, %v810
        %v812 = vrot.slane %v811, 1
        %v813 = vadd.f32 %v811, %v812
        %v814 = vsel %vm606, %v268, 0.0
        %v815 = vsel %vm606, %v269, 0.0
        %v816 = vadd.f32 %v814, %v815
        %v817 = vrot.slane %v816, 4
        %v818 = vadd.f32 %v816, %v817
        %v819 = vrot.slane %v818, 2
        %v820 = vadd.f32 %v818, %v819
        %v821 = vrot.slane %v820, 1
        %v822 = vadd.f32 %v820, %v821
        %v823 = vsel %vm606, %v270, 0.0
        %v824 = vsel %vm606, %v271, 0.0
        %v825 = vadd.f32 %v823, %v824
        %v826 = vrot.slane %v825, 4
        %v827 = vadd.f32 %v825, %v826
        %v828 = vrot.slane %v827, 2
        %v829 = vadd.f32 %v827, %v828
        %v830 = vrot.slane %v829, 1
        %v831 = vadd.f32 %v829, %v830
        %v832 = vsel %vm606, %v272, 0.0
        %v833 = vsel %vm606, %v273, 0.0
        %v834 = vadd.f32 %v832, %v833
        %v835 = vrot.slane %v834, 4
        %v836 = vadd.f32 %v834, %v835
        %v837 = vrot.slane %v836, 2
        %v838 = vadd.f32 %v836, %v837
        %v839 = vrot.slane %v838, 1
        %v840 = vadd.f32 %v838, %v839
        %v841 = vsel %vm606, %v274, 0.0
        %v842 = vsel %vm606, %v275, 0.0
        %v843 = vadd.f32 %v841, %v842
        %v844 = vrot.slane %v843, 4
        %v845 = vadd.f32 %v843, %v844
        %v846 = vrot.slane %v845, 2
        %v847 = vadd.f32 %v845, %v846
        %v848 = vrot.slane %v847, 1
        %v849 = vadd.f32 %v847, %v848
        %v850 = vsel %vm606, %v276, 0.0
        %v851 = vsel %vm606, %v277, 0.0
        %v852 = vadd.f32 %v850, %v851
        %v853 = vrot.slane %v852, 4
        %v854 = vadd.f32 %v852, %v853
        %v855 = vrot.slane %v854, 2
        %v856 = vadd.f32 %v854, %v855
        %v857 = vrot.slane %v856, 1
        %v858 = vadd.f32 %v856, %v857
        %v859 = vsel %vm606, %v278, 0.0
        %v860 = vsel %vm606, %v279, 0.0
        %v861 = vadd.f32 %v859, %v860
        %v862 = vrot.slane %v861, 4
        %v863 = vadd.f32 %v861, %v862
        %v864 = vrot.slane %v863, 2
        %v865 = vadd.f32 %v863, %v864
        %v866 = vrot.slane %v865, 1
        %v867 = vadd.f32 %v865, %v866
        %v868 = vsel %vm606, %v280, 0.0
        %v869 = vsel %vm606, %v281, 0.0
        %v870 = vadd.f32 %v868, %v869
        %v871 = vrot.slane %v870, 4
        %v872 = vadd.f32 %v870, %v871
        %v873 = vrot.slane %v872, 2
        %v874 = vadd.f32 %v872, %v873
        %v875 = vrot.slane %v874, 1
        %v876 = vadd.f32 %v874, %v875
        %v877 = vsel %vm606, %v282, 0.0
        %v878 = vsel %vm606, %v283, 0.0
        %v879 = vadd.f32 %v877, %v878
        %v880 = vrot.slane %v879, 4
        %v881 = vadd.f32 %v879, %v880
        %v882 = vrot.slane %v881, 2
        %v883 = vadd.f32 %v881, %v882
        %v884 = vrot.slane %v883, 1
        %v885 = vadd.f32 %v883, %v884
        %v886 = vsel %vm606, %v284, 0.0
        %v887 = vsel %vm606, %v285, 0.0
        %v888 = vadd.f32 %v886, %v887
        %v889 = vrot.slane %v888, 4
        %v890 = vadd.f32 %v888, %v889
        %v891 = vrot.slane %v890, 2
        %v892 = vadd.f32 %v890, %v891
        %v893 = vrot.slane %v892, 1
        %v894 = vadd.f32 %v892, %v893
        %v895 = vsel %vm606, %v286, 0.0
        %v896 = vsel %vm606, %v287, 0.0
        %v897 = vadd.f32 %v895, %v896
        %v898 = vrot.slane %v897, 4
        %v899 = vadd.f32 %v897, %v898
        %v900 = vrot.slane %v899, 2
        %v901 = vadd.f32 %v899, %v900
        %v902 = vrot.slane %v901, 1
        %v903 = vadd.f32 %v901, %v902
        %v904 = vsel %vm606, %v288, 0.0
        %v905 = vsel %vm606, %v289, 0.0
        %v906 = vadd.f32 %v904, %v905
        %v907 = vrot.slane %v906, 4
        %v908 = vadd.f32 %v906, %v907
        %v909 = vrot.slane %v908, 2
        %v910 = vadd.f32 %v908, %v909
        %v911 = vrot.slane %v910, 1
        %v912 = vadd.f32 %v910, %v911
        %v913 = vsel %vm606, %v290, 0.0
        %v914 = vsel %vm606, %v291, 0.0
        %v915 = vadd.f32 %v913, %v914
        %v916 = vrot.slane %v915, 4
        %v917 = vadd.f32 %v915, %v916
        %v918 = vrot.slane %v917, 2
        %v919 = vadd.f32 %v917, %v918
        %v920 = vrot.slane %v919, 1
        %v921 = vadd.f32 %v919, %v920
        %v922 = vsel %vm606, %v292, 0.0
        %v923 = vsel %vm606, %v293, 0.0
        %v924 = vadd.f32 %v922, %v923
        %v925 = vrot.slane %v924, 4
        %v926 = vadd.f32 %v924, %v925
        %v927 = vrot.slane %v926, 2
        %v928 = vadd.f32 %v926, %v927
        %v929 = vrot.slane %v928, 1
        %v930 = vadd.f32 %v928, %v929
        %v931 = vsel %vm606, %v294, 0.0
        %v932 = vsel %vm606, %v295, 0.0
        %v933 = vadd.f32 %v931, %v932
        %v934 = vrot.slane %v933, 4
        %v935 = vadd.f32 %v933, %v934
        %v936 = vrot.slane %v935, 2
        %v937 = vadd.f32 %v935, %v936
        %v938 = vrot.slane %v937, 1
        %v939 = vadd.f32 %v937, %v938
        %v940 = vsel %vm606, %v296, 0.0
        %v941 = vsel %vm606, %v297, 0.0
        %v942 = vadd.f32 %v940, %v941
        %v943 = vrot.slane %v942, 4
        %v944 = vadd.f32 %v942, %v943
        %v945 = vrot.slane %v944, 2
        %v946 = vadd.f32 %v944, %v945
        %v947 = vrot.slane %v946, 1
        %v948 = vadd.f32 %v946, %v947
        %v949 = vsel %vm606, %v298, 0.0
        %v950 = vsel %vm606, %v299, 0.0
        %v951 = vadd.f32 %v949, %v950
        %v952 = vrot.slane %v951, 4
        %v953 = vadd.f32 %v951, %v952
        %v954 = vrot.slane %v953, 2
        %v955 = vadd.f32 %v953, %v954
        %v956 = vrot.slane %v955, 1
        %v957 = vadd.f32 %v955, %v956
        %v958 = vsel %vm606, %v300, 0.0
        %v959 = vsel %vm606, %v301, 0.0
        %v960 = vadd.f32 %v958, %v959
        %v961 = vrot.slane %v960, 4
        %v962 = vadd.f32 %v960, %v961
        %v963 = vrot.slane %v962, 2
        %v964 = vadd.f32 %v962, %v963
        %v965 = vrot.slane %v964, 1
        %v966 = vadd.f32 %v964, %v965
        %v967 = vsel %vm606, %v302, 0.0
        %v968 = vsel %vm606, %v303, 0.0
        %v969 = vadd.f32 %v967, %v968
        %v970 = vrot.slane %v969, 4
        %v971 = vadd.f32 %v969, %v970
        %v972 = vrot.slane %v971, 2
        %v973 = vadd.f32 %v971, %v972
        %v974 = vrot.slane %v973, 1
        %v975 = vadd.f32 %v973, %v974
        %v976 = vsel %vm606, %v304, 0.0
        %v977 = vsel %vm606, %v305, 0.0
        %v978 = vadd.f32 %v976, %v977
        %v979 = vrot.slane %v978, 4
        %v980 = vadd.f32 %v978, %v979
        %v981 = vrot.slane %v980, 2
        %v982 = vadd.f32 %v980, %v981
        %v983 = vrot.slane %v982, 1
        %v984 = vadd.f32 %v982, %v983
        %v985 = vsel %vm606, %v306, 0.0
        %v986 = vsel %vm606, %v307, 0.0
        %v987 = vadd.f32 %v985, %v986
        %v988 = vrot.slane %v987, 4
        %v989 = vadd.f32 %v987, %v988
        %v990 = vrot.slane %v989, 2
        %v991 = vadd.f32 %v989, %v990
        %v992 = vrot.slane %v991, 1
        %v993 = vadd.f32 %v991, %v992
        %v994 = vsel %vm606, %v308, 0.0
        %v995 = vsel %vm606, %v309, 0.0
        %v996 = vadd.f32 %v994, %v995
        %v997 = vrot.slane %v996, 4
        %v998 = vadd.f32 %v996, %v997
        %v999 = vrot.slane %v998, 2
        %v1000 = vadd.f32 %v998, %v999
        %v1001 = vrot.slane %v1000, 1
        %v1002 = vadd.f32 %v1000, %v1001
        %v1003 = vsel %vm606, %v310, 0.0
        %v1004 = vsel %vm606, %v311, 0.0
        %v1005 = vadd.f32 %v1003, %v1004
        %v1006 = vrot.slane %v1005, 4
        %v1007 = vadd.f32 %v1005, %v1006
        %v1008 = vrot.slane %v1007, 2
        %v1009 = vadd.f32 %v1007, %v1008
        %v1010 = vrot.slane %v1009, 1
        %v1011 = vadd.f32 %v1009, %v1010
        %v1012 = vsel %vm606, %v312, 0.0
        %v1013 = vsel %vm606, %v313, 0.0
        %v1014 = vadd.f32 %v1012, %v1013
        %v1015 = vrot.slane %v1014, 4
        %v1016 = vadd.f32 %v1014, %v1015
        %v1017 = vrot.slane %v1016, 2
        %v1018 = vadd.f32 %v1016, %v1017
        %v1019 = vrot.slane %v1018, 1
        %v1020 = vadd.f32 %v1018, %v1019
        %v1021 = vsel %vm606, %v314, 0.0
        %v1022 = vsel %vm606, %v315, 0.0
        %v1023 = vadd.f32 %v1021, %v1022
        %v1024 = vrot.slane %v1023, 4
        %v1025 = vadd.f32 %v1023, %v1024
        %v1026 = vrot.slane %v1025, 2
        %v1027 = vadd.f32 %v1025, %v1026
        %v1028 = vrot.slane %v1027, 1
        %v1029 = vadd.f32 %v1027, %v1028
        %v1030 = vsel %vm606, %v316, 0.0
        %v1031 = vsel %vm606, %v317, 0.0
        %v1032 = vadd.f32 %v1030, %v1031
        %v1033 = vrot.slane %v1032, 4
        %v1034 = vadd.f32 %v1032, %v1033
        %v1035 = vrot.slane %v1034, 2
        %v1036 = vadd.f32 %v1034, %v1035
        %v1037 = vrot.slane %v1036, 1
        %v1038 = vadd.f32 %v1036, %v1037
        %v1039 = vsel %vm606, %v318, 0.0
        %v1040 = vsel %vm606, %v319, 0.0
        %v1041 = vadd.f32 %v1039, %v1040
        %v1042 = vrot.slane %v1041, 4
        %v1043 = vadd.f32 %v1041, %v1042
        %v1044 = vrot.slane %v1043, 2
        %v1045 = vadd.f32 %v1043, %v1044
        %v1046 = vrot.slane %v1045, 1
        %v1047 = vadd.f32 %v1045, %v1046
        %v1048 = vsel %vm606, %v320, 0.0
        %v1049 = vsel %vm606, %v321, 0.0
        %v1050 = vadd.f32 %v1048, %v1049
        %v1051 = vrot.slane %v1050, 4
        %v1052 = vadd.f32 %v1050, %v1051
        %v1053 = vrot.slane %v1052, 2
        %v1054 = vadd.f32 %v1052, %v1053
        %v1055 = vrot.slane %v1054, 1
        %v1056 = vadd.f32 %v1054, %v1055
        %v1057 = vsel %vm606, %v322, 0.0
        %v1058 = vsel %vm606, %v323, 0.0
        %v1059 = vadd.f32 %v1057, %v1058
        %v1060 = vrot.slane %v1059, 4
        %v1061 = vadd.f32 %v1059, %v1060
        %v1062 = vrot.slane %v1061, 2
        %v1063 = vadd.f32 %v1061, %v1062
        %v1064 = vrot.slane %v1063, 1
        %v1065 = vadd.f32 %v1063, %v1064
        %v1066 = vsel %vm606, %v324, 0.0
        %v1067 = vsel %vm606, %v325, 0.0
        %v1068 = vadd.f32 %v1066, %v1067
        %v1069 = vrot.slane %v1068, 4
        %v1070 = vadd.f32 %v1068, %v1069
        %v1071 = vrot.slane %v1070, 2
        %v1072 = vadd.f32 %v1070, %v1071
        %v1073 = vrot.slane %v1072, 1
        %v1074 = vadd.f32 %v1072, %v1073
        %v1075 = vsel %vm606, %v326, 0.0
        %v1076 = vsel %vm606, %v327, 0.0
        %v1077 = vadd.f32 %v1075, %v1076
        %v1078 = vrot.slane %v1077, 4
        %v1079 = vadd.f32 %v1077, %v1078
        %v1080 = vrot.slane %v1079, 2
        %v1081 = vadd.f32 %v1079, %v1080
        %v1082 = vrot.slane %v1081, 1
        %v1083 = vadd.f32 %v1081, %v1082
        %v1084 = vsel %vm606, %v328, 0.0
        %v1085 = vsel %vm606, %v329, 0.0
        %v1086 = vadd.f32 %v1084, %v1085
        %v1087 = vrot.slane %v1086, 4
        %v1088 = vadd.f32 %v1086, %v1087
        %v1089 = vrot.slane %v1088, 2
        %v1090 = vadd.f32 %v1088, %v1089
        %v1091 = vrot.slane %v1090, 1
        %v1092 = vadd.f32 %v1090, %v1091
        %v1093 = vsel %vm606, %v330, 0.0
        %v1094 = vsel %vm606, %v331, 0.0
        %v1095 = vadd.f32 %v1093, %v1094
        %v1096 = vrot.slane %v1095, 4
        %v1097 = vadd.f32 %v1095, %v1096
        %v1098 = vrot.slane %v1097, 2
        %v1099 = vadd.f32 %v1097, %v1098
        %v1100 = vrot.slane %v1099, 1
        %v1101 = vadd.f32 %v1099, %v1100
        %v1102 = vsel %vm606, %v332, 0.0
        %v1103 = vsel %vm606, %v333, 0.0
        %v1104 = vadd.f32 %v1102, %v1103
        %v1105 = vrot.slane %v1104, 4
        %v1106 = vadd.f32 %v1104, %v1105
        %v1107 = vrot.slane %v1106, 2
        %v1108 = vadd.f32 %v1106, %v1107
        %v1109 = vrot.slane %v1108, 1
        %v1110 = vadd.f32 %v1108, %v1109
        %v1111 = vsel %vm606, %v334, 0.0
        %v1112 = vsel %vm606, %v335, 0.0
        %v1113 = vadd.f32 %v1111, %v1112
        %v1114 = vrot.slane %v1113, 4
        %v1115 = vadd.f32 %v1113, %v1114
        %v1116 = vrot.slane %v1115, 2
        %v1117 = vadd.f32 %v1115, %v1116
        %v1118 = vrot.slane %v1117, 1
        %v1119 = vadd.f32 %v1117, %v1118
        %v1120 = vsel %vm606, %v336, 0.0
        %v1121 = vsel %vm606, %v337, 0.0
        %v1122 = vadd.f32 %v1120, %v1121
        %v1123 = vrot.slane %v1122, 4
        %v1124 = vadd.f32 %v1122, %v1123
        %v1125 = vrot.slane %v1124, 2
        %v1126 = vadd.f32 %v1124, %v1125
        %v1127 = vrot.slane %v1126, 1
        %v1128 = vadd.f32 %v1126, %v1127
        %v1129 = vsel %vm606, %v338, 0.0
        %v1130 = vsel %vm606, %v339, 0.0
        %v1131 = vadd.f32 %v1129, %v1130
        %v1132 = vrot.slane %v1131, 4
        %v1133 = vadd.f32 %v1131, %v1132
        %v1134 = vrot.slane %v1133, 2
        %v1135 = vadd.f32 %v1133, %v1134
        %v1136 = vrot.slane %v1135, 1
        %v1137 = vadd.f32 %v1135, %v1136
        %v1138 = vsel %vm606, %v340, 0.0
        %v1139 = vsel %vm606, %v341, 0.0
        %v1140 = vadd.f32 %v1138, %v1139
        %v1141 = vrot.slane %v1140, 4
        %v1142 = vadd.f32 %v1140, %v1141
        %v1143 = vrot.slane %v1142, 2
        %v1144 = vadd.f32 %v1142, %v1143
        %v1145 = vrot.slane %v1144, 1
        %v1146 = vadd.f32 %v1144, %v1145
        %v1147 = vsel %vm606, %v342, 0.0
        %v1148 = vsel %vm606, %v343, 0.0
        %v1149 = vadd.f32 %v1147, %v1148
        %v1150 = vrot.slane %v1149, 4
        %v1151 = vadd.f32 %v1149, %v1150
        %v1152 = vrot.slane %v1151, 2
        %v1153 = vadd.f32 %v1151, %v1152
        %v1154 = vrot.slane %v1153, 1
        %v1155 = vadd.f32 %v1153, %v1154
        %v1156 = vsel %vm606, %v344, 0.0
        %v1157 = vsel %vm606, %v345, 0.0
        %v1158 = vadd.f32 %v1156, %v1157
        %v1159 = vrot.slane %v1158, 4
        %v1160 = vadd.f32 %v1158, %v1159
        %v1161 = vrot.slane %v1160, 2
        %v1162 = vadd.f32 %v1160, %v1161
        %v1163 = vrot.slane %v1162, 1
        %v1164 = vadd.f32 %v1162, %v1163
        %v1165 = vsel %vm606, %v346, 0.0
        %v1166 = vsel %vm606, %v347, 0.0
        %v1167 = vadd.f32 %v1165, %v1166
        %v1168 = vrot.slane %v1167, 4
        %v1169 = vadd.f32 %v1167, %v1168
        %v1170 = vrot.slane %v1169, 2
        %v1171 = vadd.f32 %v1169, %v1170
        %v1172 = vrot.slane %v1171, 1
        %v1173 = vadd.f32 %v1171, %v1172
        %v1174 = vsel %vm606, %v348, 0.0
        %v1175 = vsel %vm606, %v349, 0.0
        %v1176 = vadd.f32 %v1174, %v1175
        %v1177 = vrot.slane %v1176, 4
        %v1178 = vadd.f32 %v1176, %v1177
        %v1179 = vrot.slane %v1178, 2
        %v1180 = vadd.f32 %v1178, %v1179
        %v1181 = vrot.slane %v1180, 1
        %v1182 = vadd.f32 %v1180, %v1181
        %v1183 = vsel %vm606, %v350, 0.0
        %v1184 = vsel %vm606, %v351, 0.0
        %v1185 = vadd.f32 %v1183, %v1184
        %v1186 = vrot.slane %v1185, 4
        %v1187 = vadd.f32 %v1185, %v1186
        %v1188 = vrot.slane %v1187, 2
        %v1189 = vadd.f32 %v1187, %v1188
        %v1190 = vrot.slane %v1189, 1
        %v1191 = vadd.f32 %v1189, %v1190
        %v1192 = vsel %vm606, %v352, 0.0
        %v1193 = vsel %vm606, %v353, 0.0
        %v1194 = vadd.f32 %v1192, %v1193
        %v1195 = vrot.slane %v1194, 4
        %v1196 = vadd.f32 %v1194, %v1195
        %v1197 = vrot.slane %v1196, 2
        %v1198 = vadd.f32 %v1196, %v1197
        %v1199 = vrot.slane %v1198, 1
        %v1200 = vadd.f32 %v1198, %v1199
        %v1201 = vsel %vm606, %v354, 0.0
        %v1202 = vsel %vm606, %v355, 0.0
        %v1203 = vadd.f32 %v1201, %v1202
        %v1204 = vrot.slane %v1203, 4
        %v1205 = vadd.f32 %v1203, %v1204
        %v1206 = vrot.slane %v1205, 2
        %v1207 = vadd.f32 %v1205, %v1206
        %v1208 = vrot.slane %v1207, 1
        %v1209 = vadd.f32 %v1207, %v1208
        %v1210 = vsel %vm606, %v356, 0.0
        %v1211 = vsel %vm606, %v357, 0.0
        %v1212 = vadd.f32 %v1210, %v1211
        %v1213 = vrot.slane %v1212, 4
        %v1214 = vadd.f32 %v1212, %v1213
        %v1215 = vrot.slane %v1214, 2
        %v1216 = vadd.f32 %v1214, %v1215
        %v1217 = vrot.slane %v1216, 1
        %v1218 = vadd.f32 %v1216, %v1217
        %v1219 = vsel %vm606, %v358, 0.0
        %v1220 = vsel %vm606, %v359, 0.0
        %v1221 = vadd.f32 %v1219, %v1220
        %v1222 = vrot.slane %v1221, 4
        %v1223 = vadd.f32 %v1221, %v1222
        %v1224 = vrot.slane %v1223, 2
        %v1225 = vadd.f32 %v1223, %v1224
        %v1226 = vrot.slane %v1225, 1
        %v1227 = vadd.f32 %v1225, %v1226
        %v1228 = vsel %vm606, %v360, 0.0
        %v1229 = vsel %vm606, %v361, 0.0
        %v1230 = vadd.f32 %v1228, %v1229
        %v1231 = vrot.slane %v1230, 4
        %v1232 = vadd.f32 %v1230, %v1231
        %v1233 = vrot.slane %v1232, 2
        %v1234 = vadd.f32 %v1232, %v1233
        %v1235 = vrot.slane %v1234, 1
        %v1236 = vadd.f32 %v1234, %v1235
        %v1237 = vsel %vm606, %v362, 0.0
        %v1238 = vsel %vm606, %v363, 0.0
        %v1239 = vadd.f32 %v1237, %v1238
        %v1240 = vrot.slane %v1239, 4
        %v1241 = vadd.f32 %v1239, %v1240
        %v1242 = vrot.slane %v1241, 2
        %v1243 = vadd.f32 %v1241, %v1242
        %v1244 = vrot.slane %v1243, 1
        %v1245 = vadd.f32 %v1243, %v1244
        %v1246 = vsel %vm606, %v364, 0.0
        %v1247 = vsel %vm606, %v365, 0.0
        %v1248 = vadd.f32 %v1246, %v1247
        %v1249 = vrot.slane %v1248, 4
        %v1250 = vadd.f32 %v1248, %v1249
        %v1251 = vrot.slane %v1250, 2
        %v1252 = vadd.f32 %v1250, %v1251
        %v1253 = vrot.slane %v1252, 1
        %v1254 = vadd.f32 %v1252, %v1253
        %v1255 = vsel %vm606, %v366, 0.0
        %v1256 = vsel %vm606, %v367, 0.0
        %v1257 = vadd.f32 %v1255, %v1256
        %v1258 = vrot.slane %v1257, 4
        %v1259 = vadd.f32 %v1257, %v1258
        %v1260 = vrot.slane %v1259, 2
        %v1261 = vadd.f32 %v1259, %v1260
        %v1262 = vrot.slane %v1261, 1
        %v1263 = vadd.f32 %v1261, %v1262
        %v1264 = vsel %vm606, %v368, 0.0
        %v1265 = vsel %vm606, %v369, 0.0
        %v1266 = vadd.f32 %v1264, %v1265
        %v1267 = vrot.slane %v1266, 4
        %v1268 = vadd.f32 %v1266, %v1267
        %v1269 = vrot.slane %v1268, 2
        %v1270 = vadd.f32 %v1268, %v1269
        %v1271 = vrot.slane %v1270, 1
        %v1272 = vadd.f32 %v1270, %v1271
        %v1273 = vsel %vm606, %v370, 0.0
        %v1274 = vsel %vm606, %v371, 0.0
        %v1275 = vadd.f32 %v1273, %v1274
        %v1276 = vrot.slane %v1275, 4
        %v1277 = vadd.f32 %v1275, %v1276
        %v1278 = vrot.slane %v1277, 2
        %v1279 = vadd.f32 %v1277, %v1278
        %v1280 = vrot.slane %v1279, 1
        %v1281 = vadd.f32 %v1279, %v1280
        %v1282 = vsel %vm606, %v372, 0.0
        %v1283 = vsel %vm606, %v373, 0.0
        %v1284 = vadd.f32 %v1282, %v1283
        %v1285 = vrot.slane %v1284, 4
        %v1286 = vadd.f32 %v1284, %v1285
        %v1287 = vrot.slane %v1286, 2
        %v1288 = vadd.f32 %v1286, %v1287
        %v1289 = vrot.slane %v1288, 1
        %v1290 = vadd.f32 %v1288, %v1289
        %v1291 = vsel %vm606, %v374, 0.0
        %v1292 = vsel %vm606, %v375, 0.0
        %v1293 = vadd.f32 %v1291, %v1292
        %v1294 = vrot.slane %v1293, 4
        %v1295 = vadd.f32 %v1293, %v1294
        %v1296 = vrot.slane %v1295, 2
        %v1297 = vadd.f32 %v1295, %v1296
        %v1298 = vrot.slane %v1297, 1
        %v1299 = vadd.f32 %v1297, %v1298
        %v1300 = vsel %vm606, %v376, 0.0
        %v1301 = vsel %vm606, %v377, 0.0
        %v1302 = vadd.f32 %v1300, %v1301
        %v1303 = vrot.slane %v1302, 4
        %v1304 = vadd.f32 %v1302, %v1303
        %v1305 = vrot.slane %v1304, 2
        %v1306 = vadd.f32 %v1304, %v1305
        %v1307 = vrot.slane %v1306, 1
        %v1308 = vadd.f32 %v1306, %v1307
        %v1309 = vsel %vm606, %v378, 0.0
        %v1310 = vsel %vm606, %v379, 0.0
        %v1311 = vadd.f32 %v1309, %v1310
        %v1312 = vrot.slane %v1311, 4
        %v1313 = vadd.f32 %v1311, %v1312
        %v1314 = vrot.slane %v1313, 2
        %v1315 = vadd.f32 %v1313, %v1314
        %v1316 = vrot.slane %v1315, 1
        %v1317 = vadd.f32 %v1315, %v1316
        %v1318 = vsel %vm606, %v380, 0.0
        %v1319 = vsel %vm606, %v381, 0.0
        %v1320 = vadd.f32 %v1318, %v1319
        %v1321 = vrot.slane %v1320, 4
        %v1322 = vadd.f32 %v1320, %v1321
        %v1323 = vrot.slane %v1322, 2
        %v1324 = vadd.f32 %v1322, %v1323
        %v1325 = vrot.slane %v1324, 1
        %v1326 = vadd.f32 %v1324, %v1325
        %v1327 = vsel %vm606, %v382, 0.0
        %v1328 = vsel %vm606, %v383, 0.0
        %v1329 = vadd.f32 %v1327, %v1328
        %v1330 = vrot.slane %v1329, 4
        %v1331 = vadd.f32 %v1329, %v1330
        %v1332 = vrot.slane %v1331, 2
        %v1333 = vadd.f32 %v1331, %v1332
        %v1334 = vrot.slane %v1333, 1
        %v1335 = vadd.f32 %v1333, %v1334
        %v1336 = vsel %vm606, %v384, 0.0
        %v1337 = vsel %vm606, %v385, 0.0
        %v1338 = vadd.f32 %v1336, %v1337
        %v1339 = vrot.slane %v1338, 4
        %v1340 = vadd.f32 %v1338, %v1339
        %v1341 = vrot.slane %v1340, 2
        %v1342 = vadd.f32 %v1340, %v1341
        %v1343 = vrot.slane %v1342, 1
        %v1344 = vadd.f32 %v1342, %v1343
        %v1345 = vsel %vm606, %v386, 0.0
        %v1346 = vsel %vm606, %v387, 0.0
        %v1347 = vadd.f32 %v1345, %v1346
        %v1348 = vrot.slane %v1347, 4
        %v1349 = vadd.f32 %v1347, %v1348
        %v1350 = vrot.slane %v1349, 2
        %v1351 = vadd.f32 %v1349, %v1350
        %v1352 = vrot.slane %v1351, 1
        %v1353 = vadd.f32 %v1351, %v1352
        %v1354 = vsel %vm606, %v388, 0.0
        %v1355 = vsel %vm606, %v389, 0.0
        %v1356 = vadd.f32 %v1354, %v1355
        %v1357 = vrot.slane %v1356, 4
        %v1358 = vadd.f32 %v1356, %v1357
        %v1359 = vrot.slane %v1358, 2
        %v1360 = vadd.f32 %v1358, %v1359
        %v1361 = vrot.slane %v1360, 1
        %v1362 = vadd.f32 %v1360, %v1361
        %v1363 = vsel %vm606, %v390, 0.0
        %v1364 = vsel %vm606, %v391, 0.0
        %v1365 = vadd.f32 %v1363, %v1364
        %v1366 = vrot.slane %v1365, 4
        %v1367 = vadd.f32 %v1365, %v1366
        %v1368 = vrot.slane %v1367, 2
        %v1369 = vadd.f32 %v1367, %v1368
        %v1370 = vrot.slane %v1369, 1
        %v1371 = vadd.f32 %v1369, %v1370
        %v1372 = vsel %vm606, %v392, 0.0
        %v1373 = vsel %vm606, %v393, 0.0
        %v1374 = vadd.f32 %v1372, %v1373
        %v1375 = vrot.slane %v1374, 4
        %v1376 = vadd.f32 %v1374, %v1375
        %v1377 = vrot.slane %v1376, 2
        %v1378 = vadd.f32 %v1376, %v1377
        %v1379 = vrot.slane %v1378, 1
        %v1380 = vadd.f32 %v1378, %v1379
        %v1381 = vsel %vm606, %v394, 0.0
        %v1382 = vsel %vm606, %v395, 0.0
        %v1383 = vadd.f32 %v1381, %v1382
        %v1384 = vrot.slane %v1383, 4
        %v1385 = vadd.f32 %v1383, %v1384
        %v1386 = vrot.slane %v1385, 2
        %v1387 = vadd.f32 %v1385, %v1386
        %v1388 = vrot.slane %v1387, 1
        %v1389 = vadd.f32 %v1387, %v1388
        %v1390 = vsel %vm606, %v396, 0.0
        %v1391 = vsel %vm606, %v397, 0.0
        %v1392 = vadd.f32 %v1390, %v1391
        %v1393 = vrot.slane %v1392, 4
        %v1394 = vadd.f32 %v1392, %v1393
        %v1395 = vrot.slane %v1394, 2
        %v1396 = vadd.f32 %v1394, %v1395
        %v1397 = vrot.slane %v1396, 1
        %v1398 = vadd.f32 %v1396, %v1397
        %v1399 = vsel %vm606, %v398, 0.0
        %v1400 = vsel %vm606, %v399, 0.0
        %v1401 = vadd.f32 %v1399, %v1400
        %v1402 = vrot.slane %v1401, 4
        %v1403 = vadd.f32 %v1401, %v1402
        %v1404 = vrot.slane %v1403, 2
        %v1405 = vadd.f32 %v1403, %v1404
        %v1406 = vrot.slane %v1405, 1
        %v1407 = vadd.f32 %v1405, %v1406
        %v1408 = vsel %vm606, %v400, 0.0
        %v1409 = vsel %vm606, %v401, 0.0
        %v1410 = vadd.f32 %v1408, %v1409
        %v1411 = vrot.slane %v1410, 4
        %v1412 = vadd.f32 %v1410, %v1411
        %v1413 = vrot.slane %v1412, 2
        %v1414 = vadd.f32 %v1412, %v1413
        %v1415 = vrot.slane %v1414, 1
        %v1416 = vadd.f32 %v1414, %v1415
        %v1417 = vsel %vm606, %v402, 0.0
        %v1418 = vsel %vm606, %v403, 0.0
        %v1419 = vadd.f32 %v1417, %v1418
        %v1420 = vrot.slane %v1419, 4
        %v1421 = vadd.f32 %v1419, %v1420
        %v1422 = vrot.slane %v1421, 2
        %v1423 = vadd.f32 %v1421, %v1422
        %v1424 = vrot.slane %v1423, 1
        %v1425 = vadd.f32 %v1423, %v1424
        %v1426 = vsel %vm606, %v404, 0.0
        %v1427 = vsel %vm606, %v405, 0.0
        %v1428 = vadd.f32 %v1426, %v1427
        %v1429 = vrot.slane %v1428, 4
        %v1430 = vadd.f32 %v1428, %v1429
        %v1431 = vrot.slane %v1430, 2
        %v1432 = vadd.f32 %v1430, %v1431
        %v1433 = vrot.slane %v1432, 1
        %v1434 = vadd.f32 %v1432, %v1433
        %v1435 = vsel %vm606, %v406, 0.0
        %v1436 = vsel %vm606, %v407, 0.0
        %v1437 = vadd.f32 %v1435, %v1436
        %v1438 = vrot.slane %v1437, 4
        %v1439 = vadd.f32 %v1437, %v1438
        %v1440 = vrot.slane %v1439, 2
        %v1441 = vadd.f32 %v1439, %v1440
        %v1442 = vrot.slane %v1441, 1
        %v1443 = vadd.f32 %v1441, %v1442
        %v1444 = vsel %vm606, %v408, 0.0
        %v1445 = vsel %vm606, %v409, 0.0
        %v1446 = vadd.f32 %v1444, %v1445
        %v1447 = vrot.slane %v1446, 4
        %v1448 = vadd.f32 %v1446, %v1447
        %v1449 = vrot.slane %v1448, 2
        %v1450 = vadd.f32 %v1448, %v1449
        %v1451 = vrot.slane %v1450, 1
        %v1452 = vadd.f32 %v1450, %v1451
        %v1453 = vsel %vm606, %v410, 0.0
        %v1454 = vsel %vm606, %v411, 0.0
        %v1455 = vadd.f32 %v1453, %v1454
        %v1456 = vrot.slane %v1455, 4
        %v1457 = vadd.f32 %v1455, %v1456
        %v1458 = vrot.slane %v1457, 2
        %v1459 = vadd.f32 %v1457, %v1458
        %v1460 = vrot.slane %v1459, 1
        %v1461 = vadd.f32 %v1459, %v1460
        %v1462 = vsel %vm606, %v412, 0.0
        %v1463 = vsel %vm606, %v413, 0.0
        %v1464 = vadd.f32 %v1462, %v1463
        %v1465 = vrot.slane %v1464, 4
        %v1466 = vadd.f32 %v1464, %v1465
        %v1467 = vrot.slane %v1466, 2
        %v1468 = vadd.f32 %v1466, %v1467
        %v1469 = vrot.slane %v1468, 1
        %v1470 = vadd.f32 %v1468, %v1469
        %v1471 = vsel %vm606, %v414, 0.0
        %v1472 = vsel %vm606, %v415, 0.0
        %v1473 = vadd.f32 %v1471, %v1472
        %v1474 = vrot.slane %v1473, 4
        %v1475 = vadd.f32 %v1473, %v1474
        %v1476 = vrot.slane %v1475, 2
        %v1477 = vadd.f32 %v1475, %v1476
        %v1478 = vrot.slane %v1477, 1
        %v1479 = vadd.f32 %v1477, %v1478
        %v1480 = vsel %vm606, %v416, 0.0
        %v1481 = vsel %vm606, %v417, 0.0
        %v1482 = vadd.f32 %v1480, %v1481
        %v1483 = vrot.slane %v1482, 4
        %v1484 = vadd.f32 %v1482, %v1483
        %v1485 = vrot.slane %v1484, 2
        %v1486 = vadd.f32 %v1484, %v1485
        %v1487 = vrot.slane %v1486, 1
        %v1488 = vadd.f32 %v1486, %v1487
        %v1489 = vsel %vm606, %v418, 0.0
        %v1490 = vsel %vm606, %v419, 0.0
        %v1491 = vadd.f32 %v1489, %v1490
        %v1492 = vrot.slane %v1491, 4
        %v1493 = vadd.f32 %v1491, %v1492
        %v1494 = vrot.slane %v1493, 2
        %v1495 = vadd.f32 %v1493, %v1494
        %v1496 = vrot.slane %v1495, 1
        %v1497 = vadd.f32 %v1495, %v1496
        %v1498 = vsel %vm606, %v420, 0.0
        %v1499 = vsel %vm606, %v421, 0.0
        %v1500 = vadd.f32 %v1498, %v1499
        %v1501 = vrot.slane %v1500, 4
        %v1502 = vadd.f32 %v1500, %v1501
        %v1503 = vrot.slane %v1502, 2
        %v1504 = vadd.f32 %v1502, %v1503
        %v1505 = vrot.slane %v1504, 1
        %v1506 = vadd.f32 %v1504, %v1505
        %v1507 = vsel %vm606, %v422, 0.0
        %v1508 = vsel %vm606, %v423, 0.0
        %v1509 = vadd.f32 %v1507, %v1508
        %v1510 = vrot.slane %v1509, 4
        %v1511 = vadd.f32 %v1509, %v1510
        %v1512 = vrot.slane %v1511, 2
        %v1513 = vadd.f32 %v1511, %v1512
        %v1514 = vrot.slane %v1513, 1
        %v1515 = vadd.f32 %v1513, %v1514
        %v1516 = vsel %vm606, %v424, 0.0
        %v1517 = vsel %vm606, %v425, 0.0
        %v1518 = vadd.f32 %v1516, %v1517
        %v1519 = vrot.slane %v1518, 4
        %v1520 = vadd.f32 %v1518, %v1519
        %v1521 = vrot.slane %v1520, 2
        %v1522 = vadd.f32 %v1520, %v1521
        %v1523 = vrot.slane %v1522, 1
        %v1524 = vadd.f32 %v1522, %v1523
        %v1525 = vsel %vm606, %v426, 0.0
        %v1526 = vsel %vm606, %v427, 0.0
        %v1527 = vadd.f32 %v1525, %v1526
        %v1528 = vrot.slane %v1527, 4
        %v1529 = vadd.f32 %v1527, %v1528
        %v1530 = vrot.slane %v1529, 2
        %v1531 = vadd.f32 %v1529, %v1530
        %v1532 = vrot.slane %v1531, 1
        %v1533 = vadd.f32 %v1531, %v1532
        %v1534 = vsel %vm606, %v428, 0.0
        %v1535 = vsel %vm606, %v429, 0.0
        %v1536 = vadd.f32 %v1534, %v1535
        %v1537 = vrot.slane %v1536, 4
        %v1538 = vadd.f32 %v1536, %v1537
        %v1539 = vrot.slane %v1538, 2
        %v1540 = vadd.f32 %v1538, %v1539
        %v1541 = vrot.slane %v1540, 1
        %v1542 = vadd.f32 %v1540, %v1541
        %v1543 = vsel %vm606, %v430, 0.0
        %v1544 = vsel %vm606, %v431, 0.0
        %v1545 = vadd.f32 %v1543, %v1544
        %v1546 = vrot.slane %v1545, 4
        %v1547 = vadd.f32 %v1545, %v1546
        %v1548 = vrot.slane %v1547, 2
        %v1549 = vadd.f32 %v1547, %v1548
        %v1550 = vrot.slane %v1549, 1
        %v1551 = vadd.f32 %v1549, %v1550
        %v1552 = vsel %vm606, %v432, 0.0
        %v1553 = vsel %vm606, %v433, 0.0
        %v1554 = vadd.f32 %v1552, %v1553
        %v1555 = vrot.slane %v1554, 4
        %v1556 = vadd.f32 %v1554, %v1555
        %v1557 = vrot.slane %v1556, 2
        %v1558 = vadd.f32 %v1556, %v1557
        %v1559 = vrot.slane %v1558, 1
        %v1560 = vadd.f32 %v1558, %v1559
        %v1561 = vsel %vm606, %v434, 0.0
        %v1562 = vsel %vm606, %v435, 0.0
        %v1563 = vadd.f32 %v1561, %v1562
        %v1564 = vrot.slane %v1563, 4
        %v1565 = vadd.f32 %v1563, %v1564
        %v1566 = vrot.slane %v1565, 2
        %v1567 = vadd.f32 %v1565, %v1566
        %v1568 = vrot.slane %v1567, 1
        %v1569 = vadd.f32 %v1567, %v1568
        %v1570 = vsel %vm606, %v436, 0.0
        %v1571 = vsel %vm606, %v437, 0.0
        %v1572 = vadd.f32 %v1570, %v1571
        %v1573 = vrot.slane %v1572, 4
        %v1574 = vadd.f32 %v1572, %v1573
        %v1575 = vrot.slane %v1574, 2
        %v1576 = vadd.f32 %v1574, %v1575
        %v1577 = vrot.slane %v1576, 1
        %v1578 = vadd.f32 %v1576, %v1577
        %v1579 = vsel %vm606, %v438, 0.0
        %v1580 = vsel %vm606, %v439, 0.0
        %v1581 = vadd.f32 %v1579, %v1580
        %v1582 = vrot.slane %v1581, 4
        %v1583 = vadd.f32 %v1581, %v1582
        %v1584 = vrot.slane %v1583, 2
        %v1585 = vadd.f32 %v1583, %v1584
        %v1586 = vrot.slane %v1585, 1
        %v1587 = vadd.f32 %v1585, %v1586
        %v1588 = vsel %vm606, %v440, 0.0
        %v1589 = vsel %vm606, %v441, 0.0
        %v1590 = vadd.f32 %v1588, %v1589
        %v1591 = vrot.slane %v1590, 4
        %v1592 = vadd.f32 %v1590, %v1591
        %v1593 = vrot.slane %v1592, 2
        %v1594 = vadd.f32 %v1592, %v1593
        %v1595 = vrot.slane %v1594, 1
        %v1596 = vadd.f32 %v1594, %v1595
        %v1597 = vsel %vm606, %v442, 0.0
        %v1598 = vsel %vm606, %v443, 0.0
        %v1599 = vadd.f32 %v1597, %v1598
        %v1600 = vrot.slane %v1599, 4
        %v1601 = vadd.f32 %v1599, %v1600
        %v1602 = vrot.slane %v1601, 2
        %v1603 = vadd.f32 %v1601, %v1602
        %v1604 = vrot.slane %v1603, 1
        %v1605 = vadd.f32 %v1603, %v1604
        %v1606 = vsel %vm606, %v444, 0.0
        %v1607 = vsel %vm606, %v445, 0.0
        %v1608 = vadd.f32 %v1606, %v1607
        %v1609 = vrot.slane %v1608, 4
        %v1610 = vadd.f32 %v1608, %v1609
        %v1611 = vrot.slane %v1610, 2
        %v1612 = vadd.f32 %v1610, %v1611
        %v1613 = vrot.slane %v1612, 1
        %v1614 = vadd.f32 %v1612, %v1613
        %v1615 = vsel %vm606, %v446, 0.0
        %v1616 = vsel %vm606, %v447, 0.0
        %v1617 = vadd.f32 %v1615, %v1616
        %v1618 = vrot.slane %v1617, 4
        %v1619 = vadd.f32 %v1617, %v1618
        %v1620 = vrot.slane %v1619, 2
        %v1621 = vadd.f32 %v1619, %v1620
        %v1622 = vrot.slane %v1621, 1
        %v1623 = vadd.f32 %v1621, %v1622
        %v1624 = vsel %vm606, %v448, 0.0
        %v1625 = vsel %vm606, %v449, 0.0
        %v1626 = vadd.f32 %v1624, %v1625
        %v1627 = vrot.slane %v1626, 4
        %v1628 = vadd.f32 %v1626, %v1627
        %v1629 = vrot.slane %v1628, 2
        %v1630 = vadd.f32 %v1628, %v1629
        %v1631 = vrot.slane %v1630, 1
        %v1632 = vadd.f32 %v1630, %v1631
        %v1633 = vsel %vm606, %v450, 0.0
        %v1634 = vsel %vm606, %v451, 0.0
        %v1635 = vadd.f32 %v1633, %v1634
        %v1636 = vrot.slane %v1635, 4
        %v1637 = vadd.f32 %v1635, %v1636
        %v1638 = vrot.slane %v1637, 2
        %v1639 = vadd.f32 %v1637, %v1638
        %v1640 = vrot.slane %v1639, 1
        %v1641 = vadd.f32 %v1639, %v1640
        %v1642 = vsel %vm606, %v452, 0.0
        %v1643 = vsel %vm606, %v453, 0.0
        %v1644 = vadd.f32 %v1642, %v1643
        %v1645 = vrot.slane %v1644, 4
        %v1646 = vadd.f32 %v1644, %v1645
        %v1647 = vrot.slane %v1646, 2
        %v1648 = vadd.f32 %v1646, %v1647
        %v1649 = vrot.slane %v1648, 1
        %v1650 = vadd.f32 %v1648, %v1649
        %v1651 = vsel %vm606, %v454, 0.0
        %v1652 = vsel %vm606, %v455, 0.0
        %v1653 = vadd.f32 %v1651, %v1652
        %v1654 = vrot.slane %v1653, 4
        %v1655 = vadd.f32 %v1653, %v1654
        %v1656 = vrot.slane %v1655, 2
        %v1657 = vadd.f32 %v1655, %v1656
        %v1658 = vrot.slane %v1657, 1
        %v1659 = vadd.f32 %v1657, %v1658
        %v1660 = vsel %vm606, %v456, 0.0
        %v1661 = vsel %vm606, %v457, 0.0
        %v1662 = vadd.f32 %v1660, %v1661
        %v1663 = vrot.slane %v1662, 4
        %v1664 = vadd.f32 %v1662, %v1663
        %v1665 = vrot.slane %v1664, 2
        %v1666 = vadd.f32 %v1664, %v1665
        %v1667 = vrot.slane %v1666, 1
        %v1668 = vadd.f32 %v1666, %v1667
        %v1669 = vsel %vm606, %v458, 0.0
        %v1670 = vsel %vm606, %v459, 0.0
        %v1671 = vadd.f32 %v1669, %v1670
        %v1672 = vrot.slane %v1671, 4
        %v1673 = vadd.f32 %v1671, %v1672
        %v1674 = vrot.slane %v1673, 2
        %v1675 = vadd.f32 %v1673, %v1674
        %v1676 = vrot.slane %v1675, 1
        %v1677 = vadd.f32 %v1675, %v1676
        %v1678 = vsel %vm606, %v460, 0.0
        %v1679 = vsel %vm606, %v461, 0.0
        %v1680 = vadd.f32 %v1678, %v1679
        %v1681 = vrot.slane %v1680, 4
        %v1682 = vadd.f32 %v1680, %v1681
        %v1683 = vrot.slane %v1682, 2
        %v1684 = vadd.f32 %v1682, %v1683
        %v1685 = vrot.slane %v1684, 1
        %v1686 = vadd.f32 %v1684, %v1685
        %v1687 = vsel %vm606, %v462, 0.0
        %v1688 = vsel %vm606, %v463, 0.0
        %v1689 = vadd.f32 %v1687, %v1688
        %v1690 = vrot.slane %v1689, 4
        %v1691 = vadd.f32 %v1689, %v1690
        %v1692 = vrot.slane %v1691, 2
        %v1693 = vadd.f32 %v1691, %v1692
        %v1694 = vrot.slane %v1693, 1
        %v1695 = vadd.f32 %v1693, %v1694
        %v1696 = vsel %vm606, %v464, 0.0
        %v1697 = vsel %vm606, %v465, 0.0
        %v1698 = vadd.f32 %v1696, %v1697
        %v1699 = vrot.slane %v1698, 4
        %v1700 = vadd.f32 %v1698, %v1699
        %v1701 = vrot.slane %v1700, 2
        %v1702 = vadd.f32 %v1700, %v1701
        %v1703 = vrot.slane %v1702, 1
        %v1704 = vadd.f32 %v1702, %v1703
        %v1705 = vsel %vm606, %v466, 0.0
        %v1706 = vsel %vm606, %v467, 0.0
        %v1707 = vadd.f32 %v1705, %v1706
        %v1708 = vrot.slane %v1707, 4
        %v1709 = vadd.f32 %v1707, %v1708
        %v1710 = vrot.slane %v1709, 2
        %v1711 = vadd.f32 %v1709, %v1710
        %v1712 = vrot.slane %v1711, 1
        %v1713 = vadd.f32 %v1711, %v1712
        %v1714 = vsel %vm606, %v468, 0.0
        %v1715 = vsel %vm606, %v469, 0.0
        %v1716 = vadd.f32 %v1714, %v1715
        %v1717 = vrot.slane %v1716, 4
        %v1718 = vadd.f32 %v1716, %v1717
        %v1719 = vrot.slane %v1718, 2
        %v1720 = vadd.f32 %v1718, %v1719
        %v1721 = vrot.slane %v1720, 1
        %v1722 = vadd.f32 %v1720, %v1721
        %v1723 = vsel %vm606, %v470, 0.0
        %v1724 = vsel %vm606, %v471, 0.0
        %v1725 = vadd.f32 %v1723, %v1724
        %v1726 = vrot.slane %v1725, 4
        %v1727 = vadd.f32 %v1725, %v1726
        %v1728 = vrot.slane %v1727, 2
        %v1729 = vadd.f32 %v1727, %v1728
        %v1730 = vrot.slane %v1729, 1
        %v1731 = vadd.f32 %v1729, %v1730
        %v1732 = vsel %vm606, %v472, 0.0
        %v1733 = vsel %vm606, %v473, 0.0
        %v1734 = vadd.f32 %v1732, %v1733
        %v1735 = vrot.slane %v1734, 4
        %v1736 = vadd.f32 %v1734, %v1735
        %v1737 = vrot.slane %v1736, 2
        %v1738 = vadd.f32 %v1736, %v1737
        %v1739 = vrot.slane %v1738, 1
        %v1740 = vadd.f32 %v1738, %v1739
        %v1741 = vsel %vm606, %v474, 0.0
        %v1742 = vsel %vm606, %v475, 0.0
        %v1743 = vadd.f32 %v1741, %v1742
        %v1744 = vrot.slane %v1743, 4
        %v1745 = vadd.f32 %v1743, %v1744
        %v1746 = vrot.slane %v1745, 2
        %v1747 = vadd.f32 %v1745, %v1746
        %v1748 = vrot.slane %v1747, 1
        %v1749 = vadd.f32 %v1747, %v1748
        %v1750 = vsel %vm606, %v476, 0.0
        %v1751 = vsel %vm606, %v477, 0.0
        %v1752 = vadd.f32 %v1750, %v1751
        %v1753 = vrot.slane %v1752, 4
        %v1754 = vadd.f32 %v1752, %v1753
        %v1755 = vrot.slane %v1754, 2
        %v1756 = vadd.f32 %v1754, %v1755
        %v1757 = vrot.slane %v1756, 1
        %v1758 = vadd.f32 %v1756, %v1757
        %v1759 = vsel %vm606, %v478, 0.0
        %v1760 = vsel %vm606, %v479, 0.0
        %v1761 = vadd.f32 %v1759, %v1760
        %v1762 = vrot.slane %v1761, 4
        %v1763 = vadd.f32 %v1761, %v1762
        %v1764 = vrot.slane %v1763, 2
        %v1765 = vadd.f32 %v1763, %v1764
        %v1766 = vrot.slane %v1765, 1
        %v1767 = vadd.f32 %v1765, %v1766
        %v1768 = vsel %vm606, %v480, 0.0
        %v1769 = vsel %vm606, %v481, 0.0
        %v1770 = vadd.f32 %v1768, %v1769
        %v1771 = vrot.slane %v1770, 4
        %v1772 = vadd.f32 %v1770, %v1771
        %v1773 = vrot.slane %v1772, 2
        %v1774 = vadd.f32 %v1772, %v1773
        %v1775 = vrot.slane %v1774, 1
        %v1776 = vadd.f32 %v1774, %v1775
        %v1777 = vsel %vm606, %v482, 0.0
        %v1778 = vsel %vm606, %v483, 0.0
        %v1779 = vadd.f32 %v1777, %v1778
        %v1780 = vrot.slane %v1779, 4
        %v1781 = vadd.f32 %v1779, %v1780
        %v1782 = vrot.slane %v1781, 2
        %v1783 = vadd.f32 %v1781, %v1782
        %v1784 = vrot.slane %v1783, 1
        %v1785 = vadd.f32 %v1783, %v1784
        %v1786 = vsel %vm606, %v484, 0.0
        %v1787 = vsel %vm606, %v485, 0.0
        %v1788 = vadd.f32 %v1786, %v1787
        %v1789 = vrot.slane %v1788, 4
        %v1790 = vadd.f32 %v1788, %v1789
        %v1791 = vrot.slane %v1790, 2
        %v1792 = vadd.f32 %v1790, %v1791
        %v1793 = vrot.slane %v1792, 1
        %v1794 = vadd.f32 %v1792, %v1793
        %v1795 = vsel %vm606, %v486, 0.0
        %v1796 = vsel %vm606, %v487, 0.0
        %v1797 = vadd.f32 %v1795, %v1796
        %v1798 = vrot.slane %v1797, 4
        %v1799 = vadd.f32 %v1797, %v1798
        %v1800 = vrot.slane %v1799, 2
        %v1801 = vadd.f32 %v1799, %v1800
        %v1802 = vrot.slane %v1801, 1
        %v1803 = vadd.f32 %v1801, %v1802
        %v1804 = vsel %vm606, %v488, 0.0
        %v1805 = vsel %vm606, %v489, 0.0
        %v1806 = vadd.f32 %v1804, %v1805
        %v1807 = vrot.slane %v1806, 4
        %v1808 = vadd.f32 %v1806, %v1807
        %v1809 = vrot.slane %v1808, 2
        %v1810 = vadd.f32 %v1808, %v1809
        %v1811 = vrot.slane %v1810, 1
        %v1812 = vadd.f32 %v1810, %v1811
        %v1813 = vsel %vm606, %v490, 0.0
        %v1814 = vsel %vm606, %v491, 0.0
        %v1815 = vadd.f32 %v1813, %v1814
        %v1816 = vrot.slane %v1815, 4
        %v1817 = vadd.f32 %v1815, %v1816
        %v1818 = vrot.slane %v1817, 2
        %v1819 = vadd.f32 %v1817, %v1818
        %v1820 = vrot.slane %v1819, 1
        %v1821 = vadd.f32 %v1819, %v1820
        %v1822 = vsel %vm606, %v492, 0.0
        %v1823 = vsel %vm606, %v493, 0.0
        %v1824 = vadd.f32 %v1822, %v1823
        %v1825 = vrot.slane %v1824, 4
        %v1826 = vadd.f32 %v1824, %v1825
        %v1827 = vrot.slane %v1826, 2
        %v1828 = vadd.f32 %v1826, %v1827
        %v1829 = vrot.slane %v1828, 1
        %v1830 = vadd.f32 %v1828, %v1829
        %v1831 = vsel %vm606, %v494, 0.0
        %v1832 = vsel %vm606, %v495, 0.0
        %v1833 = vadd.f32 %v1831, %v1832
        %v1834 = vrot.slane %v1833, 4
        %v1835 = vadd.f32 %v1833, %v1834
        %v1836 = vrot.slane %v1835, 2
        %v1837 = vadd.f32 %v1835, %v1836
        %v1838 = vrot.slane %v1837, 1
        %v1839 = vadd.f32 %v1837, %v1838
        %v1840 = vsel %vm606, %v496, 0.0
        %v1841 = vsel %vm606, %v497, 0.0
        %v1842 = vadd.f32 %v1840, %v1841
        %v1843 = vrot.slane %v1842, 4
        %v1844 = vadd.f32 %v1842, %v1843
        %v1845 = vrot.slane %v1844, 2
        %v1846 = vadd.f32 %v1844, %v1845
        %v1847 = vrot.slane %v1846, 1
        %v1848 = vadd.f32 %v1846, %v1847
        %v1849 = vsel %vm606, %v498, 0.0
        %v1850 = vsel %vm606, %v499, 0.0
        %v1851 = vadd.f32 %v1849, %v1850
        %v1852 = vrot.slane %v1851, 4
        %v1853 = vadd.f32 %v1851, %v1852
        %v1854 = vrot.slane %v1853, 2
        %v1855 = vadd.f32 %v1853, %v1854
        %v1856 = vrot.slane %v1855, 1
        %v1857 = vadd.f32 %v1855, %v1856
        %v1858 = vsel %vm606, %v500, 0.0
        %v1859 = vsel %vm606, %v501, 0.0
        %v1860 = vadd.f32 %v1858, %v1859
        %v1861 = vrot.slane %v1860, 4
        %v1862 = vadd.f32 %v1860, %v1861
        %v1863 = vrot.slane %v1862, 2
        %v1864 = vadd.f32 %v1862, %v1863
        %v1865 = vrot.slane %v1864, 1
        %v1866 = vadd.f32 %v1864, %v1865
        %v1867 = vsel %vm606, %v502, 0.0
        %v1868 = vsel %vm606, %v503, 0.0
        %v1869 = vadd.f32 %v1867, %v1868
        %v1870 = vrot.slane %v1869, 4
        %v1871 = vadd.f32 %v1869, %v1870
        %v1872 = vrot.slane %v1871, 2
        %v1873 = vadd.f32 %v1871, %v1872
        %v1874 = vrot.slane %v1873, 1
        %v1875 = vadd.f32 %v1873, %v1874
        %v1876 = vsel %vm606, %v504, 0.0
        %v1877 = vsel %vm606, %v505, 0.0
        %v1878 = vadd.f32 %v1876, %v1877
        %v1879 = vrot.slane %v1878, 4
        %v1880 = vadd.f32 %v1878, %v1879
        %v1881 = vrot.slane %v1880, 2
        %v1882 = vadd.f32 %v1880, %v1881
        %v1883 = vrot.slane %v1882, 1
        %v1884 = vadd.f32 %v1882, %v1883
        %v1885 = vsel %vm606, %v506, 0.0
        %v1886 = vsel %vm606, %v507, 0.0
        %v1887 = vadd.f32 %v1885, %v1886
        %v1888 = vrot.slane %v1887, 4
        %v1889 = vadd.f32 %v1887, %v1888
        %v1890 = vrot.slane %v1889, 2
        %v1891 = vadd.f32 %v1889, %v1890
        %v1892 = vrot.slane %v1891, 1
        %v1893 = vadd.f32 %v1891, %v1892
        %v1894 = vsel %vm606, %v508, 0.0
        %v1895 = vsel %vm606, %v509, 0.0
        %v1896 = vadd.f32 %v1894, %v1895
        %v1897 = vrot.slane %v1896, 4
        %v1898 = vadd.f32 %v1896, %v1897
        %v1899 = vrot.slane %v1898, 2
        %v1900 = vadd.f32 %v1898, %v1899
        %v1901 = vrot.slane %v1900, 1
        %v1902 = vadd.f32 %v1900, %v1901
        %v1903 = vsel %vm606, %v510, 0.0
        %v1904 = vsel %vm606, %v511, 0.0
        %v1905 = vadd.f32 %v1903, %v1904
        %v1906 = vrot.slane %v1905, 4
        %v1907 = vadd.f32 %v1905, %v1906
        %v1908 = vrot.slane %v1907, 2
        %v1909 = vadd.f32 %v1907, %v1908
        %v1910 = vrot.slane %v1909, 1
        %v1911 = vadd.f32 %v1909, %v1910
        %v1912 = vsel %vm606, %v512, 0.0
        %v1913 = vsel %vm606, %v513, 0.0
        %v1914 = vadd.f32 %v1912, %v1913
        %v1915 = vrot.slane %v1914, 4
        %v1916 = vadd.f32 %v1914, %v1915
        %v1917 = vrot.slane %v1916, 2
        %v1918 = vadd.f32 %v1916, %v1917
        %v1919 = vrot.slane %v1918, 1
        %v1920 = vadd.f32 %v1918, %v1919
        %v1921 = vsel %vm606, %v514, 0.0
        %v1922 = vsel %vm606, %v515, 0.0
        %v1923 = vadd.f32 %v1921, %v1922
        %v1924 = vrot.slane %v1923, 4
        %v1925 = vadd.f32 %v1923, %v1924
        %v1926 = vrot.slane %v1925, 2
        %v1927 = vadd.f32 %v1925, %v1926
        %v1928 = vrot.slane %v1927, 1
        %v1929 = vadd.f32 %v1927, %v1928
        %v1930 = vsel %vm606, %v516, 0.0
        %v1931 = vsel %vm606, %v517, 0.0
        %v1932 = vadd.f32 %v1930, %v1931
        %v1933 = vrot.slane %v1932, 4
        %v1934 = vadd.f32 %v1932, %v1933
        %v1935 = vrot.slane %v1934, 2
        %v1936 = vadd.f32 %v1934, %v1935
        %v1937 = vrot.slane %v1936, 1
        %v1938 = vadd.f32 %v1936, %v1937
        %v1939 = vsel %vm606, %v518, 0.0
        %v1940 = vsel %vm606, %v519, 0.0
        %v1941 = vadd.f32 %v1939, %v1940
        %v1942 = vrot.slane %v1941, 4
        %v1943 = vadd.f32 %v1941, %v1942
        %v1944 = vrot.slane %v1943, 2
        %v1945 = vadd.f32 %v1943, %v1944
        %v1946 = vrot.slane %v1945, 1
        %v1947 = vadd.f32 %v1945, %v1946
        %v1948 = vsel %vm606, %v520, 0.0
        %v1949 = vsel %vm606, %v521, 0.0
        %v1950 = vadd.f32 %v1948, %v1949
        %v1951 = vrot.slane %v1950, 4
        %v1952 = vadd.f32 %v1950, %v1951
        %v1953 = vrot.slane %v1952, 2
        %v1954 = vadd.f32 %v1952, %v1953
        %v1955 = vrot.slane %v1954, 1
        %v1956 = vadd.f32 %v1954, %v1955
        %v1957 = vsel %vm606, %v522, 0.0
        %v1958 = vsel %vm606, %v523, 0.0
        %v1959 = vadd.f32 %v1957, %v1958
        %v1960 = vrot.slane %v1959, 4
        %v1961 = vadd.f32 %v1959, %v1960
        %v1962 = vrot.slane %v1961, 2
        %v1963 = vadd.f32 %v1961, %v1962
        %v1964 = vrot.slane %v1963, 1
        %v1965 = vadd.f32 %v1963, %v1964
        %v1966 = vsel %vm606, %v524, 0.0
        %v1967 = vsel %vm606, %v525, 0.0
        %v1968 = vadd.f32 %v1966, %v1967
        %v1969 = vrot.slane %v1968, 4
        %v1970 = vadd.f32 %v1968, %v1969
        %v1971 = vrot.slane %v1970, 2
        %v1972 = vadd.f32 %v1970, %v1971
        %v1973 = vrot.slane %v1972, 1
        %v1974 = vadd.f32 %v1972, %v1973
        %v1975 = vsel %vm606, %v526, 0.0
        %v1976 = vsel %vm606, %v527, 0.0
        %v1977 = vadd.f32 %v1975, %v1976
        %v1978 = vrot.slane %v1977, 4
        %v1979 = vadd.f32 %v1977, %v1978
        %v1980 = vrot.slane %v1979, 2
        %v1981 = vadd.f32 %v1979, %v1980
        %v1982 = vrot.slane %v1981, 1
        %v1983 = vadd.f32 %v1981, %v1982
        %v1984 = vsel %vm606, %v528, 0.0
        %v1985 = vsel %vm606, %v529, 0.0
        %v1986 = vadd.f32 %v1984, %v1985
        %v1987 = vrot.slane %v1986, 4
        %v1988 = vadd.f32 %v1986, %v1987
        %v1989 = vrot.slane %v1988, 2
        %v1990 = vadd.f32 %v1988, %v1989
        %v1991 = vrot.slane %v1990, 1
        %v1992 = vadd.f32 %v1990, %v1991
        %v1993 = vsel %vm606, %v530, 0.0
        %v1994 = vsel %vm606, %v531, 0.0
        %v1995 = vadd.f32 %v1993, %v1994
        %v1996 = vrot.slane %v1995, 4
        %v1997 = vadd.f32 %v1995, %v1996
        %v1998 = vrot.slane %v1997, 2
        %v1999 = vadd.f32 %v1997, %v1998
        %v2000 = vrot.slane %v1999, 1
        %v2001 = vadd.f32 %v1999, %v2000
        %v2002 = vsel %vm606, %v532, 0.0
        %v2003 = vsel %vm606, %v533, 0.0
        %v2004 = vadd.f32 %v2002, %v2003
        %v2005 = vrot.slane %v2004, 4
        %v2006 = vadd.f32 %v2004, %v2005
        %v2007 = vrot.slane %v2006, 2
        %v2008 = vadd.f32 %v2006, %v2007
        %v2009 = vrot.slane %v2008, 1
        %v2010 = vadd.f32 %v2008, %v2009
        %v2011 = vsel %vm606, %v534, 0.0
        %v2012 = vsel %vm606, %v535, 0.0
        %v2013 = vadd.f32 %v2011, %v2012
        %v2014 = vrot.slane %v2013, 4
        %v2015 = vadd.f32 %v2013, %v2014
        %v2016 = vrot.slane %v2015, 2
        %v2017 = vadd.f32 %v2015, %v2016
        %v2018 = vrot.slane %v2017, 1
        %v2019 = vadd.f32 %v2017, %v2018
        %v2020 = vsel %vm606, %v536, 0.0
        %v2021 = vsel %vm606, %v537, 0.0
        %v2022 = vadd.f32 %v2020, %v2021
        %v2023 = vrot.slane %v2022, 4
        %v2024 = vadd.f32 %v2022, %v2023
        %v2025 = vrot.slane %v2024, 2
        %v2026 = vadd.f32 %v2024, %v2025
        %v2027 = vrot.slane %v2026, 1
        %v2028 = vadd.f32 %v2026, %v2027
        %v2029 = vsel %vm606, %v538, 0.0
        %v2030 = vsel %vm606, %v539, 0.0
        %v2031 = vadd.f32 %v2029, %v2030
        %v2032 = vrot.slane %v2031, 4
        %v2033 = vadd.f32 %v2031, %v2032
        %v2034 = vrot.slane %v2033, 2
        %v2035 = vadd.f32 %v2033, %v2034
        %v2036 = vrot.slane %v2035, 1
        %v2037 = vadd.f32 %v2035, %v2036
        %v2038 = vsel %vm606, %v540, 0.0
        %v2039 = vsel %vm606, %v541, 0.0
        %v2040 = vadd.f32 %v2038, %v2039
        %v2041 = vrot.slane %v2040, 4
        %v2042 = vadd.f32 %v2040, %v2041
        %v2043 = vrot.slane %v2042, 2
        %v2044 = vadd.f32 %v2042, %v2043
        %v2045 = vrot.slane %v2044, 1
        %v2046 = vadd.f32 %v2044, %v2045
        %v2047 = vsel %vm606, %v542, 0.0
        %v2048 = vsel %vm606, %v543, 0.0
        %v2049 = vadd.f32 %v2047, %v2048
        %v2050 = vrot.slane %v2049, 4
        %v2051 = vadd.f32 %v2049, %v2050
        %v2052 = vrot.slane %v2051, 2
        %v2053 = vadd.f32 %v2051, %v2052
        %v2054 = vrot.slane %v2053, 1
        %v2055 = vadd.f32 %v2053, %v2054
        %v2056 = vsel %vm606, %v544, 0.0
        %v2057 = vsel %vm606, %v545, 0.0
        %v2058 = vadd.f32 %v2056, %v2057
        %v2059 = vrot.slane %v2058, 4
        %v2060 = vadd.f32 %v2058, %v2059
        %v2061 = vrot.slane %v2060, 2
        %v2062 = vadd.f32 %v2060, %v2061
        %v2063 = vrot.slane %v2062, 1
        %v2064 = vadd.f32 %v2062, %v2063
        %v2065 = vsel %vm606, %v546, 0.0
        %v2066 = vsel %vm606, %v547, 0.0
        %v2067 = vadd.f32 %v2065, %v2066
        %v2068 = vrot.slane %v2067, 4
        %v2069 = vadd.f32 %v2067, %v2068
        %v2070 = vrot.slane %v2069, 2
        %v2071 = vadd.f32 %v2069, %v2070
        %v2072 = vrot.slane %v2071, 1
        %v2073 = vadd.f32 %v2071, %v2072
        %v2074 = vsel %vm606, %v548, 0.0
        %v2075 = vsel %vm606, %v549, 0.0
        %v2076 = vadd.f32 %v2074, %v2075
        %v2077 = vrot.slane %v2076, 4
        %v2078 = vadd.f32 %v2076, %v2077
        %v2079 = vrot.slane %v2078, 2
        %v2080 = vadd.f32 %v2078, %v2079
        %v2081 = vrot.slane %v2080, 1
        %v2082 = vadd.f32 %v2080, %v2081
        %v2083 = vsel %vm606, %v550, 0.0
        %v2084 = vsel %vm606, %v551, 0.0
        %v2085 = vadd.f32 %v2083, %v2084
        %v2086 = vrot.slane %v2085, 4
        %v2087 = vadd.f32 %v2085, %v2086
        %v2088 = vrot.slane %v2087, 2
        %v2089 = vadd.f32 %v2087, %v2088
        %v2090 = vrot.slane %v2089, 1
        %v2091 = vadd.f32 %v2089, %v2090
        %v2092 = vsel %vm606, %v552, 0.0
        %v2093 = vsel %vm606, %v553, 0.0
        %v2094 = vadd.f32 %v2092, %v2093
        %v2095 = vrot.slane %v2094, 4
        %v2096 = vadd.f32 %v2094, %v2095
        %v2097 = vrot.slane %v2096, 2
        %v2098 = vadd.f32 %v2096, %v2097
        %v2099 = vrot.slane %v2098, 1
        %v2100 = vadd.f32 %v2098, %v2099
        %v2101 = vsel %vm606, %v554, 0.0
        %v2102 = vsel %vm606, %v555, 0.0
        %v2103 = vadd.f32 %v2101, %v2102
        %v2104 = vrot.slane %v2103, 4
        %v2105 = vadd.f32 %v2103, %v2104
        %v2106 = vrot.slane %v2105, 2
        %v2107 = vadd.f32 %v2105, %v2106
        %v2108 = vrot.slane %v2107, 1
        %v2109 = vadd.f32 %v2107, %v2108
        %v2110 = vsel %vm606, %v556, 0.0
        %v2111 = vsel %vm606, %v557, 0.0
        %v2112 = vadd.f32 %v2110, %v2111
        %v2113 = vrot.slane %v2112, 4
        %v2114 = vadd.f32 %v2112, %v2113
        %v2115 = vrot.slane %v2114, 2
        %v2116 = vadd.f32 %v2114, %v2115
        %v2117 = vrot.slane %v2116, 1
        %v2118 = vadd.f32 %v2116, %v2117
        %v2119 = vsel %vm606, %v558, 0.0
        %v2120 = vsel %vm606, %v559, 0.0
        %v2121 = vadd.f32 %v2119, %v2120
        %v2122 = vrot.slane %v2121, 4
        %v2123 = vadd.f32 %v2121, %v2122
        %v2124 = vrot.slane %v2123, 2
        %v2125 = vadd.f32 %v2123, %v2124
        %v2126 = vrot.slane %v2125, 1
        %v2127 = vadd.f32 %v2125, %v2126
        %v2128 = vsel %vm606, %v560, 0.0
        %v2129 = vsel %vm606, %v561, 0.0
        %v2130 = vadd.f32 %v2128, %v2129
        %v2131 = vrot.slane %v2130, 4
        %v2132 = vadd.f32 %v2130, %v2131
        %v2133 = vrot.slane %v2132, 2
        %v2134 = vadd.f32 %v2132, %v2133
        %v2135 = vrot.slane %v2134, 1
        %v2136 = vadd.f32 %v2134, %v2135
        %v2137 = vsel %vm606, %v562, 0.0
        %v2138 = vsel %vm606, %v563, 0.0
        %v2139 = vadd.f32 %v2137, %v2138
        %v2140 = vrot.slane %v2139, 4
        %v2141 = vadd.f32 %v2139, %v2140
        %v2142 = vrot.slane %v2141, 2
        %v2143 = vadd.f32 %v2141, %v2142
        %v2144 = vrot.slane %v2143, 1
        %v2145 = vadd.f32 %v2143, %v2144
        %v2146 = vsel %vm606, %v564, 0.0
        %v2147 = vsel %vm606, %v565, 0.0
        %v2148 = vadd.f32 %v2146, %v2147
        %v2149 = vrot.slane %v2148, 4
        %v2150 = vadd.f32 %v2148, %v2149
        %v2151 = vrot.slane %v2150, 2
        %v2152 = vadd.f32 %v2150, %v2151
        %v2153 = vrot.slane %v2152, 1
        %v2154 = vadd.f32 %v2152, %v2153
        %v2155 = vsel %vm606, %v566, 0.0
        %v2156 = vsel %vm606, %v567, 0.0
        %v2157 = vadd.f32 %v2155, %v2156
        %v2158 = vrot.slane %v2157, 4
        %v2159 = vadd.f32 %v2157, %v2158
        %v2160 = vrot.slane %v2159, 2
        %v2161 = vadd.f32 %v2159, %v2160
        %v2162 = vrot.slane %v2161, 1
        %v2163 = vadd.f32 %v2161, %v2162
        %v2164 = vsel %vm606, %v568, 0.0
        %v2165 = vsel %vm606, %v569, 0.0
        %v2166 = vadd.f32 %v2164, %v2165
        %v2167 = vrot.slane %v2166, 4
        %v2168 = vadd.f32 %v2166, %v2167
        %v2169 = vrot.slane %v2168, 2
        %v2170 = vadd.f32 %v2168, %v2169
        %v2171 = vrot.slane %v2170, 1
        %v2172 = vadd.f32 %v2170, %v2171
        %v2173 = vsel %vm606, %v570, 0.0
        %v2174 = vsel %vm606, %v571, 0.0
        %v2175 = vadd.f32 %v2173, %v2174
        %v2176 = vrot.slane %v2175, 4
        %v2177 = vadd.f32 %v2175, %v2176
        %v2178 = vrot.slane %v2177, 2
        %v2179 = vadd.f32 %v2177, %v2178
        %v2180 = vrot.slane %v2179, 1
        %v2181 = vadd.f32 %v2179, %v2180
        %v2182 = vsel %vm606, %v572, 0.0
        %v2183 = vsel %vm606, %v573, 0.0
        %v2184 = vadd.f32 %v2182, %v2183
        %v2185 = vrot.slane %v2184, 4
        %v2186 = vadd.f32 %v2184, %v2185
        %v2187 = vrot.slane %v2186, 2
        %v2188 = vadd.f32 %v2186, %v2187
        %v2189 = vrot.slane %v2188, 1
        %v2190 = vadd.f32 %v2188, %v2189
        %v2191 = vsel %vm606, %v574, 0.0
        %v2192 = vsel %vm606, %v575, 0.0
        %v2193 = vadd.f32 %v2191, %v2192
        %v2194 = vrot.slane %v2193, 4
        %v2195 = vadd.f32 %v2193, %v2194
        %v2196 = vrot.slane %v2195, 2
        %v2197 = vadd.f32 %v2195, %v2196
        %v2198 = vrot.slane %v2197, 1
        %v2199 = vadd.f32 %v2197, %v2198
        %v2200 = vsel %vm606, %v576, 0.0
        %v2201 = vsel %vm606, %v577, 0.0
        %v2202 = vadd.f32 %v2200, %v2201
        %v2203 = vrot.slane %v2202, 4
        %v2204 = vadd.f32 %v2202, %v2203
        %v2205 = vrot.slane %v2204, 2
        %v2206 = vadd.f32 %v2204, %v2205
        %v2207 = vrot.slane %v2206, 1
        %v2208 = vadd.f32 %v2206, %v2207
        %v2209 = vsel %vm606, %v578, 0.0
        %v2210 = vsel %vm606, %v579, 0.0
        %v2211 = vadd.f32 %v2209, %v2210
        %v2212 = vrot.slane %v2211, 4
        %v2213 = vadd.f32 %v2211, %v2212
        %v2214 = vrot.slane %v2213, 2
        %v2215 = vadd.f32 %v2213, %v2214
        %v2216 = vrot.slane %v2215, 1
        %v2217 = vadd.f32 %v2215, %v2216
        %v2218 = vsel %vm606, %v580, 0.0
        %v2219 = vsel %vm606, %v581, 0.0
        %v2220 = vadd.f32 %v2218, %v2219
        %v2221 = vrot.slane %v2220, 4
        %v2222 = vadd.f32 %v2220, %v2221
        %v2223 = vrot.slane %v2222, 2
        %v2224 = vadd.f32 %v2222, %v2223
        %v2225 = vrot.slane %v2224, 1
        %v2226 = vadd.f32 %v2224, %v2225
        %v2227 = vsel %vm606, %v582, 0.0
        %v2228 = vsel %vm606, %v583, 0.0
        %v2229 = vadd.f32 %v2227, %v2228
        %v2230 = vrot.slane %v2229, 4
        %v2231 = vadd.f32 %v2229, %v2230
        %v2232 = vrot.slane %v2231, 2
        %v2233 = vadd.f32 %v2231, %v2232
        %v2234 = vrot.slane %v2233, 1
        %v2235 = vadd.f32 %v2233, %v2234
        %v2236 = vsel %vm606, %v584, 0.0
        %v2237 = vsel %vm606, %v585, 0.0
        %v2238 = vadd.f32 %v2236, %v2237
        %v2239 = vrot.slane %v2238, 4
        %v2240 = vadd.f32 %v2238, %v2239
        %v2241 = vrot.slane %v2240, 2
        %v2242 = vadd.f32 %v2240, %v2241
        %v2243 = vrot.slane %v2242, 1
        %v2244 = vadd.f32 %v2242, %v2243
        %v2245 = vsel %vm606, %v586, 0.0
        %v2246 = vsel %vm606, %v587, 0.0
        %v2247 = vadd.f32 %v2245, %v2246
        %v2248 = vrot.slane %v2247, 4
        %v2249 = vadd.f32 %v2247, %v2248
        %v2250 = vrot.slane %v2249, 2
        %v2251 = vadd.f32 %v2249, %v2250
        %v2252 = vrot.slane %v2251, 1
        %v2253 = vadd.f32 %v2251, %v2252
        %v2254 = vsel %vm606, %v588, 0.0
        %v2255 = vsel %vm606, %v589, 0.0
        %v2256 = vadd.f32 %v2254, %v2255
        %v2257 = vrot.slane %v2256, 4
        %v2258 = vadd.f32 %v2256, %v2257
        %v2259 = vrot.slane %v2258, 2
        %v2260 = vadd.f32 %v2258, %v2259
        %v2261 = vrot.slane %v2260, 1
        %v2262 = vadd.f32 %v2260, %v2261
        %v2263 = vsel %vm606, %v590, 0.0
        %v2264 = vsel %vm606, %v591, 0.0
        %v2265 = vadd.f32 %v2263, %v2264
        %v2266 = vrot.slane %v2265, 4
        %v2267 = vadd.f32 %v2265, %v2266
        %v2268 = vrot.slane %v2267, 2
        %v2269 = vadd.f32 %v2267, %v2268
        %v2270 = vrot.slane %v2269, 1
        %v2271 = vadd.f32 %v2269, %v2270
        %v2272 = vsel %vm606, %v592, 0.0
        %v2273 = vsel %vm606, %v593, 0.0
        %v2274 = vadd.f32 %v2272, %v2273
        %v2275 = vrot.slane %v2274, 4
        %v2276 = vadd.f32 %v2274, %v2275
        %v2277 = vrot.slane %v2276, 2
        %v2278 = vadd.f32 %v2276, %v2277
        %v2279 = vrot.slane %v2278, 1
        %v2280 = vadd.f32 %v2278, %v2279
        %v2281 = vsel %vm606, %v594, 0.0
        %v2282 = vsel %vm606, %v595, 0.0
        %v2283 = vadd.f32 %v2281, %v2282
        %v2284 = vrot.slane %v2283, 4
        %v2285 = vadd.f32 %v2283, %v2284
        %v2286 = vrot.slane %v2285, 2
        %v2287 = vadd.f32 %v2285, %v2286
        %v2288 = vrot.slane %v2287, 1
        %v2289 = vadd.f32 %v2287, %v2288
        %v2290 = vsel %vm606, %v596, 0.0
        %v2291 = vsel %vm606, %v597, 0.0
        %v2292 = vadd.f32 %v2290, %v2291
        %v2293 = vrot.slane %v2292, 4
        %v2294 = vadd.f32 %v2292, %v2293
        %v2295 = vrot.slane %v2294, 2
        %v2296 = vadd.f32 %v2294, %v2295
        %v2297 = vrot.slane %v2296, 1
        %v2298 = vadd.f32 %v2296, %v2297
        %v2299 = vsel %vm606, %v598, 0.0
        %v2300 = vsel %vm606, %v599, 0.0
        %v2301 = vadd.f32 %v2299, %v2300
        %v2302 = vrot.slane %v2301, 4
        %v2303 = vadd.f32 %v2301, %v2302
        %v2304 = vrot.slane %v2303, 2
        %v2305 = vadd.f32 %v2303, %v2304
        %v2306 = vrot.slane %v2305, 1
        %v2307 = vadd.f32 %v2305, %v2306
        %v2308 = vsel %vm606, %v600, 0.0
        %v2309 = vsel %vm606, %v601, 0.0
        %v2310 = vadd.f32 %v2308, %v2309
        %v2311 = vrot.slane %v2310, 4
        %v2312 = vadd.f32 %v2310, %v2311
        %v2313 = vrot.slane %v2312, 2
        %v2314 = vadd.f32 %v2312, %v2313
        %v2315 = vrot.slane %v2314, 1
        %v2316 = vadd.f32 %v2314, %v2315
        %v2317 = vsel %vm606, %v602, 0.0
        %v2318 = vsel %vm606, %v603, 0.0
        %v2319 = vadd.f32 %v2317, %v2318
        %v2320 = vrot.slane %v2319, 4
        %v2321 = vadd.f32 %v2319, %v2320
        %v2322 = vrot.slane %v2321, 2
        %v2323 = vadd.f32 %v2321, %v2322
        %v2324 = vrot.slane %v2323, 1
        %v2325 = vadd.f32 %v2323, %v2324
        %v2326 = vsel %vm606, %v604, 0.0
        %v2327 = vsel %vm606, %v605, 0.0
        %v2328 = vadd.f32 %v2326, %v2327
        %v2329 = vrot.slane %v2328, 4
        %v2330 = vadd.f32 %v2328, %v2329
        %v2331 = vrot.slane %v2330, 2
        %v2332 = vadd.f32 %v2330, %v2331
        %v2333 = vrot.slane %v2332, 1
        %v2334 = vadd.f32 %v2332, %v2333
        %vm2527 = vcmask 1041409
        %v2528 = vsel %vm2527, %v624, %v615
        %vm2529 = vcmask 1042434
        %v2530 = vsel %vm2529, %v633, %v2528
        %vm2531 = vcmask 1043459
        %v2532 = vsel %vm2531, %v642, %v2530
        %vm2533 = vcmask 1044484
        %v2534 = vsel %vm2533, %v651, %v2532
        %vm2535 = vcmask 1045509
        %v2536 = vsel %vm2535, %v660, %v2534
        %vm2537 = vcmask 1046534
        %v2538 = vsel %vm2537, %v669, %v2536
        %vm2539 = vcmask 1047559
        %v2540 = vsel %vm2539, %v678, %v2538
        %v2541 = vsel %vm2527, %v696, %v687
        %v2542 = vsel %vm2529, %v705, %v2541
        %v2543 = vsel %vm2531, %v714, %v2542
        %v2544 = vsel %vm2533, %v723, %v2543
        %v2545 = vsel %vm2535, %v732, %v2544
        %v2546 = vsel %vm2537, %v741, %v2545
        %v2547 = vsel %vm2539, %v750, %v2546
        %v2548 = vsel %vm2527, %v768, %v759
        %v2549 = vsel %vm2529, %v777, %v2548
        %v2550 = vsel %vm2531, %v786, %v2549
        %v2551 = vsel %vm2533, %v795, %v2550
        %v2552 = vsel %vm2535, %v804, %v2551
        %v2553 = vsel %vm2537, %v813, %v2552
        %v2554 = vsel %vm2539, %v822, %v2553
        %v2555 = vsel %vm2527, %v840, %v831
        %v2556 = vsel %vm2529, %v849, %v2555
        %v2557 = vsel %vm2531, %v858, %v2556
        %v2558 = vsel %vm2533, %v867, %v2557
        %v2559 = vsel %vm2535, %v876, %v2558
        %v2560 = vsel %vm2537, %v885, %v2559
        %v2561 = vsel %vm2539, %v894, %v2560
        %v2562 = vsel %vm2527, %v912, %v903
        %v2563 = vsel %vm2529, %v921, %v2562
        %v2564 = vsel %vm2531, %v930, %v2563
        %v2565 = vsel %vm2533, %v939, %v2564
        %v2566 = vsel %vm2535, %v948, %v2565
        %v2567 = vsel %vm2537, %v957, %v2566
        %v2568 = vsel %vm2539, %v966, %v2567
        %v2569 = vsel %vm2527, %v984, %v975
        %v2570 = vsel %vm2529, %v993, %v2569
        %v2571 = vsel %vm2531, %v1002, %v2570
        %v2572 = vsel %vm2533, %v1011, %v2571
        %v2573 = vsel %vm2535, %v1020, %v2572
        %v2574 = vsel %vm2537, %v1029, %v2573
        %v2575 = vsel %vm2539, %v1038, %v2574
        %v2576 = vsel %vm2527, %v1056, %v1047
        %v2577 = vsel %vm2529, %v1065, %v2576
        %v2578 = vsel %vm2531, %v1074, %v2577
        %v2579 = vsel %vm2533, %v1083, %v2578
        %v2580 = vsel %vm2535, %v1092, %v2579
        %v2581 = vsel %vm2537, %v1101, %v2580
        %v2582 = vsel %vm2539, %v1110, %v2581
        %v2583 = vsel %vm2527, %v1128, %v1119
        %v2584 = vsel %vm2529, %v1137, %v2583
        %v2585 = vsel %vm2531, %v1146, %v2584
        %v2586 = vsel %vm2533, %v1155, %v2585
        %v2587 = vsel %vm2535, %v1164, %v2586
        %v2588 = vsel %vm2537, %v1173, %v2587
        %v2589 = vsel %vm2539, %v1182, %v2588
        %v2590 = vsel %vm2527, %v1200, %v1191
        %v2591 = vsel %vm2529, %v1209, %v2590
        %v2592 = vsel %vm2531, %v1218, %v2591
        %v2593 = vsel %vm2533, %v1227, %v2592
        %v2594 = vsel %vm2535, %v1236, %v2593
        %v2595 = vsel %vm2537, %v1245, %v2594
        %v2596 = vsel %vm2539, %v1254, %v2595
        %v2597 = vsel %vm2527, %v1272, %v1263
        %v2598 = vsel %vm2529, %v1281, %v2597
        %v2599 = vsel %vm2531, %v1290, %v2598
        %v2600 = vsel %vm2533, %v1299, %v2599
        %v2601 = vsel %vm2535, %v1308, %v2600
        %v2602 = vsel %vm2537, %v1317, %v2601
        %v2603 = vsel %vm2539, %v1326, %v2602
        %v2604 = vsel %vm2527, %v1344, %v1335
        %v2605 = vsel %vm2529, %v1353, %v2604
        %v2606 = vsel %vm2531, %v1362, %v2605
        %v2607 = vsel %vm2533, %v1371, %v2606
        %v2608 = vsel %vm2535, %v1380, %v2607
        %v2609 = vsel %vm2537, %v1389, %v2608
        %v2610 = vsel %vm2539, %v1398, %v2609
        %v2611 = vsel %vm2527, %v1416, %v1407
        %v2612 = vsel %vm2529, %v1425, %v2611
        %v2613 = vsel %vm2531, %v1434, %v2612
        %v2614 = vsel %vm2533, %v1443, %v2613
        %v2615 = vsel %vm2535, %v1452, %v2614
        %v2616 = vsel %vm2537, %v1461, %v2615
        %v2617 = vsel %vm2539, %v1470, %v2616
        %v2618 = vsel %vm2527, %v1488, %v1479
        %v2619 = vsel %vm2529, %v1497, %v2618
        %v2620 = vsel %vm2531, %v1506, %v2619
        %v2621 = vsel %vm2533, %v1515, %v2620
        %v2622 = vsel %vm2535, %v1524, %v2621
        %v2623 = vsel %vm2537, %v1533, %v2622
        %v2624 = vsel %vm2539, %v1542, %v2623
        %v2625 = vsel %vm2527, %v1560, %v1551
        %v2626 = vsel %vm2529, %v1569, %v2625
        %v2627 = vsel %vm2531, %v1578, %v2626
        %v2628 = vsel %vm2533, %v1587, %v2627
        %v2629 = vsel %vm2535, %v1596, %v2628
        %v2630 = vsel %vm2537, %v1605, %v2629
        %v2631 = vsel %vm2539, %v1614, %v2630
        %v2632 = vsel %vm2527, %v1632, %v1623
        %v2633 = vsel %vm2529, %v1641, %v2632
        %v2634 = vsel %vm2531, %v1650, %v2633
        %v2635 = vsel %vm2533, %v1659, %v2634
        %v2636 = vsel %vm2535, %v1668, %v2635
        %v2637 = vsel %vm2537, %v1677, %v2636
        %v2638 = vsel %vm2539, %v1686, %v2637
        %v2639 = vsel %vm2527, %v1704, %v1695
        %v2640 = vsel %vm2529, %v1713, %v2639
        %v2641 = vsel %vm2531, %v1722, %v2640
        %v2642 = vsel %vm2533, %v1731, %v2641
        %v2643 = vsel %vm2535, %v1740, %v2642
        %v2644 = vsel %vm2537, %v1749, %v2643
        %v2645 = vsel %vm2539, %v1758, %v2644
        %v2646 = vsel %vm2527, %v1776, %v1767
        %v2647 = vsel %vm2529, %v1785, %v2646
        %v2648 = vsel %vm2531, %v1794, %v2647
        %v2649 = vsel %vm2533, %v1803, %v2648
        %v2650 = vsel %vm2535, %v1812, %v2649
        %v2651 = vsel %vm2537, %v1821, %v2650
        %v2652 = vsel %vm2539, %v1830, %v2651
        %v2653 = vsel %vm2527, %v1848, %v1839
        %v2654 = vsel %vm2529, %v1857, %v2653
        %v2655 = vsel %vm2531, %v1866, %v2654
        %v2656 = vsel %vm2533, %v1875, %v2655
        %v2657 = vsel %vm2535, %v1884, %v2656
        %v2658 = vsel %vm2537, %v1893, %v2657
        %v2659 = vsel %vm2539, %v1902, %v2658
        %v2660 = vsel %vm2527, %v1920, %v1911
        %v2661 = vsel %vm2529, %v1929, %v2660
        %v2662 = vsel %vm2531, %v1938, %v2661
        %v2663 = vsel %vm2533, %v1947, %v2662
        %v2664 = vsel %vm2535, %v1956, %v2663
        %v2665 = vsel %vm2537, %v1965, %v2664
        %v2666 = vsel %vm2539, %v1974, %v2665
        %v2667 = vsel %vm2527, %v1992, %v1983
        %v2668 = vsel %vm2529, %v2001, %v2667
        %v2669 = vsel %vm2531, %v2010, %v2668
        %v2670 = vsel %vm2533, %v2019, %v2669
        %v2671 = vsel %vm2535, %v2028, %v2670
        %v2672 = vsel %vm2537, %v2037, %v2671
        %v2673 = vsel %vm2539, %v2046, %v2672
        %v2674 = vsel %vm2527, %v2064, %v2055
        %v2675 = vsel %vm2529, %v2073, %v2674
        %v2676 = vsel %vm2531, %v2082, %v2675
        %v2677 = vsel %vm2533, %v2091, %v2676
        %v2678 = vsel %vm2535, %v2100, %v2677
        %v2679 = vsel %vm2537, %v2109, %v2678
        %v2680 = vsel %vm2539, %v2118, %v2679
        %v2681 = vsel %vm2527, %v2136, %v2127
        %v2682 = vsel %vm2529, %v2145, %v2681
        %v2683 = vsel %vm2531, %v2154, %v2682
        %v2684 = vsel %vm2533, %v2163, %v2683
        %v2685 = vsel %vm2535, %v2172, %v2684
        %v2686 = vsel %vm2537, %v2181, %v2685
        %v2687 = vsel %vm2539, %v2190, %v2686
        %v2688 = vsel %vm2527, %v2208, %v2199
        %v2689 = vsel %vm2529, %v2217, %v2688
        %v2690 = vsel %vm2531, %v2226, %v2689
        %v2691 = vsel %vm2533, %v2235, %v2690
        %v2692 = vsel %vm2535, %v2244, %v2691
        %v2693 = vsel %vm2537, %v2253, %v2692
        %v2694 = vsel %vm2539, %v2262, %v2693
        %v2695 = vsel %vm2527, %v2280, %v2271
        %v2696 = vsel %vm2529, %v2289, %v2695
        %v2697 = vsel %vm2531, %v2298, %v2696
        %v2698 = vsel %vm2533, %v2307, %v2697
        %v2699 = vsel %vm2535, %v2316, %v2698
        %v2700 = vsel %vm2537, %v2325, %v2699
        %v2701 = vsel %vm2539, %v2334, %v2700
        %v2726 = vsel %vm606, %v2540, 0.0
        %2727 = vadd.xlane.f32.xlu0 %v2726
        %v2728 = vpop.xlane.xlu0 %2727
        %v2729 = vsel %vm606, %v2547, 0.0
        %2730 = vadd.xlane.f32.xlu0 %v2729
        %v2731 = vpop.xlane.xlu0 %2730
        %v2732 = vsel %vm606, %v2554, 0.0
        %2733 = vadd.xlane.f32.xlu0 %v2732
        %v2734 = vpop.xlane.xlu0 %2733
        %v2735 = vsel %vm606, %v2561, 0.0
        %2736 = vadd.xlane.f32.xlu0 %v2735
        %v2737 = vpop.xlane.xlu0 %2736
        %v2738 = vsel %vm606, %v2568, 0.0
        %2739 = vadd.xlane.f32.xlu0 %v2738
        %v2740 = vpop.xlane.xlu0 %2739
        %v2741 = vsel %vm606, %v2575, 0.0
        %2742 = vadd.xlane.f32.xlu0 %v2741
        %v2743 = vpop.xlane.xlu0 %2742
        %v2744 = vsel %vm606, %v2582, 0.0
        %2745 = vadd.xlane.f32.xlu0 %v2744
        %v2746 = vpop.xlane.xlu0 %2745
        %v2747 = vsel %vm606, %v2589, 0.0
        %2748 = vadd.xlane.f32.xlu0 %v2747
        %v2749 = vpop.xlane.xlu0 %2748
        %v2750 = vsel %vm606, %v2596, 0.0
        %2751 = vadd.xlane.f32.xlu0 %v2750
        %v2752 = vpop.xlane.xlu0 %2751
        %v2753 = vsel %vm606, %v2603, 0.0
        %2754 = vadd.xlane.f32.xlu0 %v2753
        %v2755 = vpop.xlane.xlu0 %2754
        %v2756 = vsel %vm606, %v2610, 0.0
        %2757 = vadd.xlane.f32.xlu0 %v2756
        %v2758 = vpop.xlane.xlu0 %2757
        %v2759 = vsel %vm606, %v2617, 0.0
        %2760 = vadd.xlane.f32.xlu0 %v2759
        %v2761 = vpop.xlane.xlu0 %2760
        %v2762 = vsel %vm606, %v2624, 0.0
        %2763 = vadd.xlane.f32.xlu0 %v2762
        %v2764 = vpop.xlane.xlu0 %2763
        %v2765 = vsel %vm606, %v2631, 0.0
        %2766 = vadd.xlane.f32.xlu0 %v2765
        %v2767 = vpop.xlane.xlu0 %2766
        %v2768 = vsel %vm606, %v2638, 0.0
        %2769 = vadd.xlane.f32.xlu0 %v2768
        %v2770 = vpop.xlane.xlu0 %2769
        %v2771 = vsel %vm606, %v2645, 0.0
        %2772 = vadd.xlane.f32.xlu0 %v2771
        %v2773 = vpop.xlane.xlu0 %2772
        %v2774 = vsel %vm606, %v2652, 0.0
        %2775 = vadd.xlane.f32.xlu0 %v2774
        %v2776 = vpop.xlane.xlu0 %2775
        %v2777 = vsel %vm606, %v2659, 0.0
        %2778 = vadd.xlane.f32.xlu0 %v2777
        %v2779 = vpop.xlane.xlu0 %2778
        %v2780 = vsel %vm606, %v2666, 0.0
        %2781 = vadd.xlane.f32.xlu0 %v2780
        %v2782 = vpop.xlane.xlu0 %2781
        %v2783 = vsel %vm606, %v2673, 0.0
        %2784 = vadd.xlane.f32.xlu0 %v2783
        %v2785 = vpop.xlane.xlu0 %2784
        %v2786 = vsel %vm606, %v2680, 0.0
        %2787 = vadd.xlane.f32.xlu0 %v2786
        %v2788 = vpop.xlane.xlu0 %2787
        %v2789 = vsel %vm606, %v2687, 0.0
        %2790 = vadd.xlane.f32.xlu0 %v2789
        %v2791 = vpop.xlane.xlu0 %2790
        %v2792 = vsel %vm606, %v2694, 0.0
        %2793 = vadd.xlane.f32.xlu0 %v2792
        %v2794 = vpop.xlane.xlu0 %2793
        %v2795 = vsel %vm606, %v2701, 0.0
        %2796 = vadd.xlane.f32.xlu0 %v2795
        %v2797 = vpop.xlane.xlu0 %2796
        %v2798 = vmul.f32 %v2728, 0.00390625
        %v2799 = vmul.f32 %v2731, 0.00390625
        %v2800 = vmul.f32 %v2734, 0.00390625
        %v2801 = vmul.f32 %v2737, 0.00390625
        %v2802 = vmul.f32 %v2740, 0.00390625
        %v2803 = vmul.f32 %v2743, 0.00390625
        %v2804 = vmul.f32 %v2746, 0.00390625
        %v2805 = vmul.f32 %v2749, 0.00390625
        %v2806 = vmul.f32 %v2752, 0.00390625
        %v2807 = vmul.f32 %v2755, 0.00390625
        %v2808 = vmul.f32 %v2758, 0.00390625
        %v2809 = vmul.f32 %v2761, 0.00390625
        %v2810 = vmul.f32 %v2764, 0.00390625
        %v2811 = vmul.f32 %v2767, 0.00390625
        %v2812 = vmul.f32 %v2770, 0.00390625
        %v2813 = vmul.f32 %v2773, 0.00390625
        %v2814 = vmul.f32 %v2776, 0.00390625
        %v2815 = vmul.f32 %v2779, 0.00390625
        %v2816 = vmul.f32 %v2782, 0.00390625
        %v2817 = vmul.f32 %v2785, 0.00390625
        %v2818 = vmul.f32 %v2788, 0.00390625
        %v2819 = vmul.f32 %v2791, 0.00390625
        %v2820 = vmul.f32 %v2794, 0.00390625
        %v2821 = vmul.f32 %v2797, 0.00390625
        %v2822 = vadd.f32 %v2798, %v2799
        %v2823 = vadd.f32 %v2822, %v2800
        %v2824 = vadd.f32 %v2823, %v2801
        %v2825 = vadd.f32 %v2824, %v2802
        %v2826 = vadd.f32 %v2825, %v2803
        %v2827 = vadd.f32 %v2826, %v2804
        %v2828 = vadd.f32 %v2827, %v2805
        %v2829 = vadd.f32 %v2828, %v2806
        %v2830 = vadd.f32 %v2829, %v2807
        %v2831 = vadd.f32 %v2830, %v2808
        %v2832 = vadd.f32 %v2831, %v2809
        %v2833 = vadd.f32 %v2832, %v2810
        %v2834 = vadd.f32 %v2833, %v2811
        %v2835 = vadd.f32 %v2834, %v2812
        %v2836 = vadd.f32 %v2835, %v2813
        %v2837 = vadd.f32 %v2836, %v2814
        %v2838 = vadd.f32 %v2837, %v2815
        %v2839 = vadd.f32 %v2838, %v2816
        %v2840 = vadd.f32 %v2839, %v2817
        %v2841 = vadd.f32 %v2840, %v2818
        %v2842 = vadd.f32 %v2841, %v2819
        %v2843 = vadd.f32 %v2842, %v2820
        %v2844 = vadd.f32 %v2843, %v2821
        %v2845 = vrot.slane %v2844, 4
        %v2846 = vadd.f32 %v2844, %v2845
        %v2847 = vrot.slane %v2846, 2
        %v2848 = vadd.f32 %v2846, %v2847
        %v2849 = vrot.slane %v2848, 1
        %v2850 = vadd.f32 %v2848, %v2849
        %v2851 = vrcp.pop 192.0
        %v2852 = vmul.f32 %v2850, %v2851
        %v2853 = vsub.f32 %v2798, %v2852
        %v2854 = vsub.f32 %v2799, %v2852
        %v2855 = vsub.f32 %v2800, %v2852
        %v2856 = vsub.f32 %v2801, %v2852
        %v2857 = vsub.f32 %v2802, %v2852
        %v2858 = vsub.f32 %v2803, %v2852
        %v2859 = vsub.f32 %v2804, %v2852
        %v2860 = vsub.f32 %v2805, %v2852
        %v2861 = vsub.f32 %v2806, %v2852
        %v2862 = vsub.f32 %v2807, %v2852
        %v2863 = vsub.f32 %v2808, %v2852
        %v2864 = vsub.f32 %v2809, %v2852
        %v2865 = vsub.f32 %v2810, %v2852
        %v2866 = vsub.f32 %v2811, %v2852
        %v2867 = vsub.f32 %v2812, %v2852
        %v2868 = vsub.f32 %v2813, %v2852
        %v2869 = vsub.f32 %v2814, %v2852
        %v2870 = vsub.f32 %v2815, %v2852
        %v2871 = vsub.f32 %v2816, %v2852
        %v2872 = vsub.f32 %v2817, %v2852
        %v2873 = vsub.f32 %v2818, %v2852
        %v2874 = vsub.f32 %v2819, %v2852
        %v2875 = vsub.f32 %v2820, %v2852
        %v2876 = vsub.f32 %v2821, %v2852
        %v2877 = vmul.f32 %v2853, %v2853
        %v2878 = vmul.f32 %v2854, %v2854
        %v2879 = vmul.f32 %v2855, %v2855
        %v2880 = vmul.f32 %v2856, %v2856
        %v2881 = vmul.f32 %v2857, %v2857
        %v2882 = vmul.f32 %v2858, %v2858
        %v2883 = vmul.f32 %v2859, %v2859
        %v2884 = vmul.f32 %v2860, %v2860
        %v2885 = vmul.f32 %v2861, %v2861
        %v2886 = vmul.f32 %v2862, %v2862
        %v2887 = vmul.f32 %v2863, %v2863
        %v2888 = vmul.f32 %v2864, %v2864
        %v2889 = vmul.f32 %v2865, %v2865
        %v2890 = vmul.f32 %v2866, %v2866
        %v2891 = vmul.f32 %v2867, %v2867
        %v2892 = vmul.f32 %v2868, %v2868
        %v2893 = vmul.f32 %v2869, %v2869
        %v2894 = vmul.f32 %v2870, %v2870
        %v2895 = vmul.f32 %v2871, %v2871
        %v2896 = vmul.f32 %v2872, %v2872
        %v2897 = vmul.f32 %v2873, %v2873
        %v2898 = vmul.f32 %v2874, %v2874
        %v2899 = vmul.f32 %v2875, %v2875
        %v2900 = vmul.f32 %v2876, %v2876
        %v2901 = vadd.f32 %v2877, %v2878
        %v2902 = vadd.f32 %v2901, %v2879
        %v2903 = vadd.f32 %v2902, %v2880
        %v2904 = vadd.f32 %v2903, %v2881
        %v2905 = vadd.f32 %v2904, %v2882
        %v2906 = vadd.f32 %v2905, %v2883
        %v2907 = vadd.f32 %v2906, %v2884
        %v2908 = vadd.f32 %v2907, %v2885
        %v2909 = vadd.f32 %v2908, %v2886
        %v2910 = vadd.f32 %v2909, %v2887
        %v2911 = vadd.f32 %v2910, %v2888
        %v2912 = vadd.f32 %v2911, %v2889
        %v2913 = vadd.f32 %v2912, %v2890
        %v2914 = vadd.f32 %v2913, %v2891
        %v2915 = vadd.f32 %v2914, %v2892
        %v2916 = vadd.f32 %v2915, %v2893
        %v2917 = vadd.f32 %v2916, %v2894
        %v2918 = vadd.f32 %v2917, %v2895
        %v2919 = vadd.f32 %v2918, %v2896
        %v2920 = vadd.f32 %v2919, %v2897
        %v2921 = vadd.f32 %v2920, %v2898
        %v2922 = vadd.f32 %v2921, %v2899
        %v2923 = vadd.f32 %v2922, %v2900
        %v2924 = vrot.slane %v2923, 4
        %v2925 = vadd.f32 %v2923, %v2924
        %v2926 = vrot.slane %v2925, 2
        %v2927 = vadd.f32 %v2925, %v2926
        %v2928 = vrot.slane %v2927, 1
        %v2929 = vadd.f32 %v2927, %v2928
        %v2930 = vmul.f32 %v2929, %v2851
        %v2931 = vadd.f32 %v2930, 1e-05
        %v2932 = vrsqrt.pop %v2931
        %v2933 = vmul.f32 %v2853, %v2932
        %v2934 = vmul.f32 %v2854, %v2932
        %v2935 = vmul.f32 %v2855, %v2932
        %v2936 = vmul.f32 %v2856, %v2932
        %v2937 = vmul.f32 %v2857, %v2932
        %v2938 = vmul.f32 %v2858, %v2932
        %v2939 = vmul.f32 %v2859, %v2932
        %v2940 = vmul.f32 %v2860, %v2932
        %v2941 = vmul.f32 %v2861, %v2932
        %v2942 = vmul.f32 %v2862, %v2932
        %v2943 = vmul.f32 %v2863, %v2932
        %v2944 = vmul.f32 %v2864, %v2932
        %v2945 = vmul.f32 %v2865, %v2932
        %v2946 = vmul.f32 %v2866, %v2932
        %v2947 = vmul.f32 %v2867, %v2932
        %v2948 = vmul.f32 %v2868, %v2932
        %v2949 = vmul.f32 %v2869, %v2932
        %v2950 = vmul.f32 %v2870, %v2932
        %v2951 = vmul.f32 %v2871, %v2932
        %v2952 = vmul.f32 %v2872, %v2932
        %v2953 = vmul.f32 %v2873, %v2932
        %v2954 = vmul.f32 %v2874, %v2932
        %v2955 = vmul.f32 %v2875, %v2932
        %v2956 = vmul.f32 %v2876, %v2932
        %v2957 = vld [vmem:[%s1] sm:$0xff]
        %v2958 = vld [vmem:[%s1 + $0x8] sm:$0xff]
        %v2959 = vld [vmem:[%s1 + $0x10] sm:$0xff]
        %v2960 = vld [vmem:[%s1 + $0x18] sm:$0xff]
        %v2961 = vld [vmem:[%s1 + $0x20] sm:$0xff]
        %v2962 = vld [vmem:[%s1 + $0x28] sm:$0xff]
        %v2963 = vld [vmem:[%s1 + $0x30] sm:$0xff]
        %v2964 = vld [vmem:[%s1 + $0x38] sm:$0xff]
        %v2965 = vld [vmem:[%s1 + $0x40] sm:$0xff]
        %v2966 = vld [vmem:[%s1 + $0x48] sm:$0xff]
        %v2967 = vld [vmem:[%s1 + $0x50] sm:$0xff]
        %v2968 = vld [vmem:[%s1 + $0x58] sm:$0xff]
        %v2969 = vld [vmem:[%s1 + $0x60] sm:$0xff]
        %v2970 = vld [vmem:[%s1 + $0x68] sm:$0xff]
        %v2971 = vld [vmem:[%s1 + $0x70] sm:$0xff]
        %v2972 = vld [vmem:[%s1 + $0x78] sm:$0xff]
        %v2973 = vld [vmem:[%s1 + $0x80] sm:$0xff]
        %v2974 = vld [vmem:[%s1 + $0x88] sm:$0xff]
        %v2975 = vld [vmem:[%s1 + $0x90] sm:$0xff]
        %v2976 = vld [vmem:[%s1 + $0x98] sm:$0xff]
        %v2977 = vld [vmem:[%s1 + $0xa0] sm:$0xff]
        %v2978 = vld [vmem:[%s1 + $0xa8] sm:$0xff]
        %v2979 = vld [vmem:[%s1 + $0xb0] sm:$0xff]
        %v2980 = vld [vmem:[%s1 + $0xb8] sm:$0xff]
        %v2981 = vmul.f32 %v2933, %v2957
        %v2982 = vmul.f32 %v2934, %v2958
        %v2983 = vmul.f32 %v2935, %v2959
        %v2984 = vmul.f32 %v2936, %v2960
        %v2985 = vmul.f32 %v2937, %v2961
        %v2986 = vmul.f32 %v2938, %v2962
        %v2987 = vmul.f32 %v2939, %v2963
        %v2988 = vmul.f32 %v2940, %v2964
        %v2989 = vmul.f32 %v2941, %v2965
        %v2990 = vmul.f32 %v2942, %v2966
        %v2991 = vmul.f32 %v2943, %v2967
        %v2992 = vmul.f32 %v2944, %v2968
        %v2993 = vmul.f32 %v2945, %v2969
        %v2994 = vmul.f32 %v2946, %v2970
        %v2995 = vmul.f32 %v2947, %v2971
        %v2996 = vmul.f32 %v2948, %v2972
        %v2997 = vmul.f32 %v2949, %v2973
        %v2998 = vmul.f32 %v2950, %v2974
        %v2999 = vmul.f32 %v2951, %v2975
        %v3000 = vmul.f32 %v2952, %v2976
        %v3001 = vmul.f32 %v2953, %v2977
        %v3002 = vmul.f32 %v2954, %v2978
        %v3003 = vmul.f32 %v2955, %v2979
        %v3004 = vmul.f32 %v2956, %v2980
        %v3005 = vld [vmem:[%s2] sm:$0xff]
        %v3006 = vld [vmem:[%s2 + $0x8] sm:$0xff]
        %v3007 = vld [vmem:[%s2 + $0x10] sm:$0xff]
        %v3008 = vld [vmem:[%s2 + $0x18] sm:$0xff]
        %v3009 = vld [vmem:[%s2 + $0x20] sm:$0xff]
        %v3010 = vld [vmem:[%s2 + $0x28] sm:$0xff]
        %v3011 = vld [vmem:[%s2 + $0x30] sm:$0xff]
        %v3012 = vld [vmem:[%s2 + $0x38] sm:$0xff]
        %v3013 = vld [vmem:[%s2 + $0x40] sm:$0xff]
        %v3014 = vld [vmem:[%s2 + $0x48] sm:$0xff]
        %v3015 = vld [vmem:[%s2 + $0x50] sm:$0xff]
        %v3016 = vld [vmem:[%s2 + $0x58] sm:$0xff]
        %v3017 = vld [vmem:[%s2 + $0x60] sm:$0xff]
        %v3018 = vld [vmem:[%s2 + $0x68] sm:$0xff]
        %v3019 = vld [vmem:[%s2 + $0x70] sm:$0xff]
        %v3020 = vld [vmem:[%s2 + $0x78] sm:$0xff]
        %v3021 = vld [vmem:[%s2 + $0x80] sm:$0xff]
        %v3022 = vld [vmem:[%s2 + $0x88] sm:$0xff]
        %v3023 = vld [vmem:[%s2 + $0x90] sm:$0xff]
        %v3024 = vld [vmem:[%s2 + $0x98] sm:$0xff]
        %v3025 = vld [vmem:[%s2 + $0xa0] sm:$0xff]
        %v3026 = vld [vmem:[%s2 + $0xa8] sm:$0xff]
        %v3027 = vld [vmem:[%s2 + $0xb0] sm:$0xff]
        %v3028 = vld [vmem:[%s2 + $0xb8] sm:$0xff]
        %v3029 = vadd.f32 %v2981, %v3005
        %v3030 = vadd.f32 %v2982, %v3006
        %v3031 = vadd.f32 %v2983, %v3007
        %v3032 = vadd.f32 %v2984, %v3008
        %v3033 = vadd.f32 %v2985, %v3009
        %v3034 = vadd.f32 %v2986, %v3010
        %v3035 = vadd.f32 %v2987, %v3011
        %v3036 = vadd.f32 %v2988, %v3012
        %v3037 = vadd.f32 %v2989, %v3013
        %v3038 = vadd.f32 %v2990, %v3014
        %v3039 = vadd.f32 %v2991, %v3015
        %v3040 = vadd.f32 %v2992, %v3016
        %v3041 = vadd.f32 %v2993, %v3017
        %v3042 = vadd.f32 %v2994, %v3018
        %v3043 = vadd.f32 %v2995, %v3019
        %v3044 = vadd.f32 %v2996, %v3020
        %v3045 = vadd.f32 %v2997, %v3021
        %v3046 = vadd.f32 %v2998, %v3022
        %v3047 = vadd.f32 %v2999, %v3023
        %v3048 = vadd.f32 %v3000, %v3024
        %v3049 = vadd.f32 %v3001, %v3025
        %v3050 = vadd.f32 %v3002, %v3026
        %v3051 = vadd.f32 %v3003, %v3027
        %v3052 = vadd.f32 %v3004, %v3028
        %v3053 = vld [vmem:[%s3] sm:$0xff]
        %v3054 = vld [vmem:[%s3 + $0x8] sm:$0xff]
        %v3055 = vld [vmem:[%s3 + $0x10] sm:$0xff]
        %v3056 = vld [vmem:[%s3 + $0x18] sm:$0xff]
        %v3057 = vld [vmem:[%s3 + $0x20] sm:$0xff]
        %v3058 = vld [vmem:[%s3 + $0x28] sm:$0xff]
        %v3059 = vld [vmem:[%s3 + $0x30] sm:$0xff]
        %v3060 = vld [vmem:[%s3 + $0x38] sm:$0xff]
        %v3061 = vld [vmem:[%s3 + $0x40] sm:$0xff]
        %v3062 = vld [vmem:[%s3 + $0x48] sm:$0xff]
        %v3063 = vld [vmem:[%s3 + $0x50] sm:$0xff]
        %v3064 = vld [vmem:[%s3 + $0x58] sm:$0xff]
        %v3065 = vld [vmem:[%s3 + $0x60] sm:$0xff]
        %v3066 = vld [vmem:[%s3 + $0x68] sm:$0xff]
        %v3067 = vld [vmem:[%s3 + $0x70] sm:$0xff]
        %v3068 = vld [vmem:[%s3 + $0x78] sm:$0xff]
        %v3069 = vld [vmem:[%s3 + $0x80] sm:$0xff]
        %v3070 = vld [vmem:[%s3 + $0x88] sm:$0xff]
        %v3071 = vld [vmem:[%s3 + $0x90] sm:$0xff]
        %v3072 = vld [vmem:[%s3 + $0x98] sm:$0xff]
        %v3073 = vld [vmem:[%s3 + $0xa0] sm:$0xff]
        %v3074 = vld [vmem:[%s3 + $0xa8] sm:$0xff]
        %v3075 = vld [vmem:[%s3 + $0xb0] sm:$0xff]
        %v3076 = vld [vmem:[%s3 + $0xb8] sm:$0xff]
        %3078 = vset.pattern.permute.xlu0 0
        %3079 = vperm.xlu0 %3078, %v3029
        %v3080 = vpop.permute.xlu0 %3079
        %3083 = vset.pattern.permute.xlu0 0
        %3084 = vperm.xlu0 %3083, %v3030
        %v3085 = vpop.permute.xlu0 %3084
        %3088 = vset.pattern.permute.xlu0 0
        %3089 = vperm.xlu0 %3088, %v3031
        %v3090 = vpop.permute.xlu0 %3089
        %3093 = vset.pattern.permute.xlu0 0
        %3094 = vperm.xlu0 %3093, %v3032
        %v3095 = vpop.permute.xlu0 %3094
        %3098 = vset.pattern.permute.xlu0 0
        %3099 = vperm.xlu0 %3098, %v3033
        %v3100 = vpop.permute.xlu0 %3099
        %3103 = vset.pattern.permute.xlu0 0
        %3104 = vperm.xlu0 %3103, %v3034
        %v3105 = vpop.permute.xlu0 %3104
        %3108 = vset.pattern.permute.xlu0 0
        %3109 = vperm.xlu0 %3108, %v3035
        %v3110 = vpop.permute.xlu0 %3109
        %3113 = vset.pattern.permute.xlu0 0
        %3114 = vperm.xlu0 %3113, %v3036
        %v3115 = vpop.permute.xlu0 %3114
        %3118 = vset.pattern.permute.xlu0 0
        %3119 = vperm.xlu0 %3118, %v3037
        %v3120 = vpop.permute.xlu0 %3119
        %3123 = vset.pattern.permute.xlu0 0
        %3124 = vperm.xlu0 %3123, %v3038
        %v3125 = vpop.permute.xlu0 %3124
        %3128 = vset.pattern.permute.xlu0 0
        %3129 = vperm.xlu0 %3128, %v3039
        %v3130 = vpop.permute.xlu0 %3129
        %3133 = vset.pattern.permute.xlu0 0
        %3134 = vperm.xlu0 %3133, %v3040
        %v3135 = vpop.permute.xlu0 %3134
        %3138 = vset.pattern.permute.xlu0 0
        %3139 = vperm.xlu0 %3138, %v3041
        %v3140 = vpop.permute.xlu0 %3139
        %3143 = vset.pattern.permute.xlu0 0
        %3144 = vperm.xlu0 %3143, %v3042
        %v3145 = vpop.permute.xlu0 %3144
        %3148 = vset.pattern.permute.xlu0 0
        %3149 = vperm.xlu0 %3148, %v3043
        %v3150 = vpop.permute.xlu0 %3149
        %3153 = vset.pattern.permute.xlu0 0
        %3154 = vperm.xlu0 %3153, %v3044
        %v3155 = vpop.permute.xlu0 %3154
        %3158 = vset.pattern.permute.xlu0 0
        %3159 = vperm.xlu0 %3158, %v3045
        %v3160 = vpop.permute.xlu0 %3159
        %3163 = vset.pattern.permute.xlu0 0
        %3164 = vperm.xlu0 %3163, %v3046
        %v3165 = vpop.permute.xlu0 %3164
        %3168 = vset.pattern.permute.xlu0 0
        %3169 = vperm.xlu0 %3168, %v3047
        %v3170 = vpop.permute.xlu0 %3169
        %3173 = vset.pattern.permute.xlu0 0
        %3174 = vperm.xlu0 %3173, %v3048
        %v3175 = vpop.permute.xlu0 %3174
        %3178 = vset.pattern.permute.xlu0 0
        %3179 = vperm.xlu0 %3178, %v3049
        %v3180 = vpop.permute.xlu0 %3179
        %3183 = vset.pattern.permute.xlu0 0
        %3184 = vperm.xlu0 %3183, %v3050
        %v3185 = vpop.permute.xlu0 %3184
        %3188 = vset.pattern.permute.xlu0 0
        %3189 = vperm.xlu0 %3188, %v3051
        %v3190 = vpop.permute.xlu0 %3189
        %3193 = vset.pattern.permute.xlu0 0
        %3194 = vperm.xlu0 %3193, %v3052
        %v3195 = vpop.permute.xlu0 %3194
        %v3197 = vmul.f32 %v3080, %v3053
        %v3198 = vmul.f32 %v3085, %v3054
        %v3199 = vmul.f32 %v3090, %v3055
        %v3200 = vmul.f32 %v3095, %v3056
        %v3201 = vmul.f32 %v3100, %v3057
        %v3202 = vmul.f32 %v3105, %v3058
        %v3203 = vmul.f32 %v3110, %v3059
        %v3204 = vmul.f32 %v3115, %v3060
        %v3205 = vmul.f32 %v3120, %v3061
        %v3206 = vmul.f32 %v3125, %v3062
        %v3207 = vmul.f32 %v3130, %v3063
        %v3208 = vmul.f32 %v3135, %v3064
        %v3209 = vmul.f32 %v3140, %v3065
        %v3210 = vmul.f32 %v3145, %v3066
        %v3211 = vmul.f32 %v3150, %v3067
        %v3212 = vmul.f32 %v3155, %v3068
        %v3213 = vmul.f32 %v3160, %v3069
        %v3214 = vmul.f32 %v3165, %v3070
        %v3215 = vmul.f32 %v3170, %v3071
        %v3216 = vmul.f32 %v3175, %v3072
        %v3217 = vmul.f32 %v3180, %v3073
        %v3218 = vmul.f32 %v3185, %v3074
        %v3219 = vmul.f32 %v3190, %v3075
        %v3220 = vmul.f32 %v3195, %v3076
        %vm3221 = vcmask 15360
        %v3222 = vsel %vm3221, %v3197, 0.0
        %v3223 = vsel %vm3221, %v3198, 0.0
        %v3224 = vadd.f32 %v3222, %v3223
        %v3225 = vsel %vm3221, %v3199, 0.0
        %v3226 = vadd.f32 %v3224, %v3225
        %v3227 = vsel %vm3221, %v3200, 0.0
        %v3228 = vadd.f32 %v3226, %v3227
        %v3229 = vsel %vm3221, %v3201, 0.0
        %v3230 = vadd.f32 %v3228, %v3229
        %v3231 = vsel %vm3221, %v3202, 0.0
        %v3232 = vadd.f32 %v3230, %v3231
        %v3233 = vsel %vm3221, %v3203, 0.0
        %v3234 = vadd.f32 %v3232, %v3233
        %v3235 = vsel %vm3221, %v3204, 0.0
        %v3236 = vadd.f32 %v3234, %v3235
        %v3237 = vsel %vm3221, %v3205, 0.0
        %v3238 = vadd.f32 %v3236, %v3237
        %v3239 = vsel %vm3221, %v3206, 0.0
        %v3240 = vadd.f32 %v3238, %v3239
        %v3241 = vsel %vm3221, %v3207, 0.0
        %v3242 = vadd.f32 %v3240, %v3241
        %v3243 = vsel %vm3221, %v3208, 0.0
        %v3244 = vadd.f32 %v3242, %v3243
        %v3245 = vsel %vm3221, %v3209, 0.0
        %v3246 = vadd.f32 %v3244, %v3245
        %v3247 = vsel %vm3221, %v3210, 0.0
        %v3248 = vadd.f32 %v3246, %v3247
        %v3249 = vsel %vm3221, %v3211, 0.0
        %v3250 = vadd.f32 %v3248, %v3249
        %v3251 = vsel %vm3221, %v3212, 0.0
        %v3252 = vadd.f32 %v3250, %v3251
        %v3253 = vsel %vm3221, %v3213, 0.0
        %v3254 = vadd.f32 %v3252, %v3253
        %v3255 = vsel %vm3221, %v3214, 0.0
        %v3256 = vadd.f32 %v3254, %v3255
        %v3257 = vsel %vm3221, %v3215, 0.0
        %v3258 = vadd.f32 %v3256, %v3257
        %v3259 = vsel %vm3221, %v3216, 0.0
        %v3260 = vadd.f32 %v3258, %v3259
        %v3261 = vsel %vm3221, %v3217, 0.0
        %v3262 = vadd.f32 %v3260, %v3261
        %v3263 = vsel %vm3221, %v3218, 0.0
        %v3264 = vadd.f32 %v3262, %v3263
        %v3265 = vsel %vm3221, %v3219, 0.0
        %v3266 = vadd.f32 %v3264, %v3265
        %v3267 = vsel %vm3221, %v3220, 0.0
        %v3268 = vadd.f32 %v3266, %v3267
        %v3269 = vrot.slane %v3268, 4
        %v3270 = vadd.f32 %v3268, %v3269
        %v3271 = vrot.slane %v3270, 2
        %v3272 = vadd.f32 %v3270, %v3271
        %v3273 = vrot.slane %v3272, 1
        %v3274 = vadd.f32 %v3272, %v3273
        %v3275 = vld [vmem:[%s4] sm:$0x1]
        %v3276 = vadd.f32 %v3274, %v3275
        %vm3277 = vcmask 8192
        %3278 = vst.msk [vmem:[%s216] sm:$0x1] %vm3277, %v3276
        %s3279 = sand.u32 %s137, 1
        %s3280 = scalar_lea.sflag [#allocation3], %s3279
        %s3281 = sand.u32 %s137, 1
        %s3282 = scalar_lea.vmem [#allocation2], %s3281
        // Predicated region
        $region41: #{tpu_custom_call.1} parent=39 // pred_check
          %p3283 = pneg %p147
        $region42: #{tpu_custom_call.1} parent=39 // pred_check_branch
          %3285 = sbr.rel (%p3283) target = $region44
        $region43: #{tpu_custom_call.1} parent=39 // pred_region
          %s3287 = ssub.s32 16, 16
          %3288 = vsyncadd %s3280, %s3287
          %s3289 = smul.addr %s19, 16
          %s3290 = scalar_lea.hbm %s5, %s3289
          %s3292 = sshll.u32 %s3282, 4
          %s3293 = int_to_ptr.vmem [resolvable:$true] %s3292
          %3295 = dma.vmem_to_hbm [thread:$0]  %s3293, 16, %s3290, %s3280
        $region44: #{tpu_custom_call.1} parent=39 // pred_fallthru
          _
      $region40: #{tpu_custom_call.1} parent=5 // pred_fallthru
        _
      %p3296 = scmp.le.s32.totalorder 2, %s14
      // Predicated region
      $region45: #{tpu_custom_call.1} parent=5 // pred_check
        %p3297 = pneg %p3296
      $region46: #{tpu_custom_call.1} parent=5 // pred_check_branch
        %3299 = sbr.rel (%p3297) target = $region48
      $region47: #{tpu_custom_call.1} parent=5 // pred_region
        %s3300 = ssub.s32 %s14, 2
        // Predicated region
        $region49: #{tpu_custom_call.1} parent=47 // pred_check
          %p3301 = pneg %p153
        $region50: #{tpu_custom_call.1} parent=47 // pred_check_branch
          %3303 = sbr.rel (%p3301) target = $region52
        $region51: #{tpu_custom_call.1} parent=47 // pred_region
          %s3304 = sand.u32 %s138, 1
          %s3305 = scalar_lea.sflag [#allocation3], %s3304
          %s3306 = sand.u32 %s138, 1
          %s3307 = scalar_lea.vmem [#allocation2], %s3306
          %3308 = dma.done %s3305, 16
        $region52: #{tpu_custom_call.1} parent=47 // pred_fallthru
          _
      $region48: #{tpu_custom_call.1} parent=5 // pred_fallthru
        _
    $region6: #{tpu_custom_call.1} parent=1 // loop_footer
      %s18 = sadd.s32 1, %s14
    $region7: #{tpu_custom_call.1} parent=1 // loop_footer_branch
      %13 = sbr.rel target = $region3
    $region8: #{tpu_custom_call.1} parent=1 // loop_exit
      _
    %3309 = vsyncpa [#allocation3], 1
    %s3310 = scalar_lea.sflag [#allocation3], 1
    %3311 = vsyncpa %s3310, 1

</llo_original>
